<compile_context>
chip_gen: v7x
topology: tpu7x:2x2x1
jax: 0.10.0
libtpu: 0.0.40
codegen_flags: <defaults>
</compile_context>

<pallas_src>
import functools
import math

import jax
import jax.numpy as jnp
from jax import lax
from jax.experimental import pallas as pl
from jax.experimental.pallas import tpu as pltpu


# ----------------------------- kernel helpers -----------------------------

def _layernorm(x, gamma, beta, eps=1e-5):
    # x: (T, C) f32, gamma/beta: (C,) f32 broadcast over rows
    mean = jnp.mean(x, axis=-1, keepdims=True)
    var = jnp.mean((x - mean) ** 2, axis=-1, keepdims=True)
    return (x - mean) * lax.rsqrt(var + eps) * gamma + beta


def _gelu_tanh(x):
    # PyTorch nn.GELU(approximate='tanh'), f32
    c = math.sqrt(2.0 / math.pi)
    return 0.5 * x * (1.0 + jnp.tanh(c * (x + 0.044715 * x * x * x)))


# ------------------------------- the kernel -------------------------------

def block_kernel(x_ref,
                 ln1_g_ref, ln1_b_ref,
                 wqkv_ref, bqkv_ref,
                 wproj_ref, bproj_ref,
                 ln2_g_ref, ln2_b_ref,
                 wfc_ref, bfc_ref,
                 wfc2_ref, bfc2_ref,
                 o_ref,
                 qkv_scr,            # VMEM (T, 3C)        bf16 — QKV staging
                 q_scr, k_scr, v_scr,  # VMEM (H, T, hd)   bf16 — head-major
                 y_scr,              # VMEM (T, C)         bf16 — attn output
                 *, n_head, head_group):
    T, C = x_ref.shape[1], x_ref.shape[2]
    hd = C // n_head
    scale = 1.0 / math.sqrt(hd)

    # Additive causal bias, built once per grid step (folded into the scores
    # with a single add; finite so a masked row cannot NaN).
    row = lax.broadcasted_iota(jnp.int32, (T, T), 0)
    col = lax.broadcasted_iota(jnp.int32, (T, T), 1)
    causal_bias = jnp.where(col <= row, 0.0, -1e30).astype(jnp.float32)

    # ---------------- attention branch ----------------
    xn = _layernorm(x_ref[0], ln1_g_ref[0], ln1_b_ref[0])
    # bf16 x bf16 -> f32 accumulate on the MXU; result goes straight to VMEM
    # scratch (full-width, lane-dense store) instead of living as an f32 value.
    qkv_scr[...] = (
        jnp.dot(xn.astype(jnp.bfloat16), wqkv_ref[...],
                preferred_element_type=jnp.float32) + bqkv_ref[0]
    ).astype(jnp.bfloat16)

    # Repack to head-major (H, T, hd): static ref window reads, full-tile
    # writes.  Softmax scale is folded into Q here (one mul, removes the
    # per-score multiply).
    for h in range(n_head):
        lo = h * hd
        q_scr[h] = qkv_scr[:, lo:lo + hd] * scale
        k_scr[h] = qkv_scr[:, C + lo:C + lo + hd]
        v_scr[h] = qkv_scr[:, 2 * C + lo:2 * C + lo + hd]

    # Batched attention over groups of heads (bounds the (G, T, T) f32 score
    # block; G == n_head for small T).
    n_groups = n_head // head_group
    for g in range(n_groups):
        g0 = g * head_group
        g1 = g0 + head_group
        qg = q_scr[g0:g1]                                   # (G, T, hd) bf16
        kg = k_scr[g0:g1]
        vg = v_scr[g0:g1]
        s = jnp.einsum('gtd,gsd->gts', qg, kg,
                       preferred_element_type=jnp.float32) + causal_bias
        s = s - jnp.max(s, axis=-1, keepdims=True)
        p = jnp.exp(s)
        inv = pl.reciprocal(jnp.sum(p, axis=-1, keepdims=True), approx=True)
        p = p * inv
        yg = jnp.einsum('gts,gsd->gtd', p.astype(jnp.bfloat16), vg,
                        preferred_element_type=jnp.float32)  # (G, T, hd) f32
        # Pack back to (T, C) column layout so the projection is one full-K
        # matmul (narrow column stores are far cheaper than H K=hd matmuls).
        for i in range(head_group):
            lo = (g0 + i) * hd
            y_scr[:, lo:lo + hd] = yg[i].astype(jnp.bfloat16)

    # Output projection + first residual.  o_ref doubles as the residual
    # stream buffer (VMEM) until the final writeback.
    o_ref[0] = (x_ref[0]
                + jnp.dot(y_scr[...], wproj_ref[...],
                          preferred_element_type=jnp.float32)
                + bproj_ref[0])

    # ---------------- MLP branch ----------------
    xn2 = _layernorm(o_ref[0], ln2_g_ref[0], ln2_b_ref[0])
    h1 = jnp.dot(xn2.astype(jnp.bfloat16), wfc_ref[...],
                 preferred_element_type=jnp.float32) + bfc_ref[0]   # (T, 4C)
    h1 = _gelu_tanh(h1)
    o_ref[0] = o_ref[0] + (jnp.dot(h1.astype(jnp.bfloat16), wfc2_ref[...],
                                   preferred_element_type=jnp.float32)
                           + bfc2_ref[0])


# ------------------------------- wrapper -----------------------------------

def transformer_block(x, params, n_head):
    """x: (B, T, C) f32.  params: dict of f32 arrays (see init_params)."""
    B, T, C = x.shape
    assert C % n_head == 0
    hd = C // n_head

    weight_order = ["ln1_g", "ln1_b", "w_qkv", "b_qkv", "w_proj", "b_proj",
                    "ln2_g", "ln2_b", "w_fc", "b_fc", "w_fc2", "b_fc2"]

    def prep(name, arr):
        # 1-D params -> (1, N) so they live in 2-D VMEM tiles.
        if arr.ndim == 1:
            arr = arr.reshape(1, -1)
        # Matmul weights in bf16 (MXU inputs); LN params / biases stay f32.
        if name.startswith("w_"):
            arr = arr.astype(jnp.bfloat16)
        return arr

    weight_args = [prep(k, params[k]) for k in weight_order]

    def weight_spec(arr):
        # Whole-array block, same block every grid step -> single-buffer it.
        nd = arr.ndim
        return pl.BlockSpec(arr.shape, lambda b, _nd=nd: (0,) * _nd,
                            pipeline_mode=pl.Buffered(buffer_count=1))

    # Head-group size: largest divisor of n_head keeping the (G, T, T) f32
    # score block under ~8 MiB.
    max_group = max(1, (8 << 20) // max(1, 4 * T * T))
    head_group = 1
    for g in range(1, n_head + 1):
        if n_head % g == 0 and g <= max_group:
            head_group = g

    kernel = functools.partial(block_kernel, n_head=n_head,
                               head_group=head_group)

    # --- cost estimate (hint for XLA scheduling around the custom call) ---
    weight_bytes = sum(int(w.size) * w.dtype.itemsize for w in weight_args)
    flops = 2 * B * T * (12 * C * C + 2 * T * C)
    transcendentals = B * (n_head * T * T + 4 * T * C + 2 * T)
    bytes_accessed = 2 * B * T * C * 4 + weight_bytes
    cost = pl.CostEstimate(flops=int(flops),
                           transcendentals=int(transcendentals),
                           bytes_accessed=int(bytes_accessed))

    # --- VMEM budget: footprint-derived, capped per generation ---
    io_bytes = 2 * 2 * T * C * 4                       # double-buffered x, o
    scratch_bytes = T * 3 * C * 2 * 2 + T * C * 2      # qkv stage + qkv heads + y
    live_bytes = (2 * head_group * T * T * 4           # scores + probs (f32)
                  + T * 4 * C * 4                      # (T, 4C) f32 hidden
                  + 4 * T * C * 4)                     # misc f32 temporaries
    est = weight_bytes + io_bytes + scratch_bytes + live_bytes
    cap = 110 * (1 << 20)                              # v5e / v6e (128 MiB phys)
    try:
        if "v7" in jax.devices()[0].device_kind.lower():
            cap = 48 * (1 << 20)                       # v7x: 64 MiB phys - headroom
    except Exception:
        pass
    vmem_limit = int(min(max(est * 3 // 2, 64 * (1 << 20)), cap))

    return pl.pallas_call(
        kernel,
        out_shape=jax.ShapeDtypeStruct((B, T, C), jnp.float32),
        grid_spec=pltpu.PrefetchScalarGridSpec(
            num_scalar_prefetch=0,
            grid=(B,),
            in_specs=[pl.BlockSpec((1, T, C), lambda b: (b, 0, 0))]
                     + [weight_spec(w) for w in weight_args],
            out_specs=pl.BlockSpec((1, T, C), lambda b: (b, 0, 0)),
            scratch_shapes=[
                pltpu.VMEM((T, 3 * C), jnp.bfloat16),      # QKV staging
                pltpu.VMEM((n_head, T, hd), jnp.bfloat16),  # Q head-major
                pltpu.VMEM((n_head, T, hd), jnp.bfloat16),  # K head-major
                pltpu.VMEM((n_head, T, hd), jnp.bfloat16),  # V head-major
                pltpu.VMEM((T, C), jnp.bfloat16),           # attn out (T, C)
            ],
        ),
        compiler_params=pltpu.CompilerParams(
            dimension_semantics=("parallel",),
            vmem_limit_bytes=vmem_limit,
        ),
        cost_estimate=cost,
    )(x, *weight_args)


# --------------------------- parameter creation -----------------------------

def init_params(key, n_embd):
    ks = jax.random.split(key, 8)
    s = 0.02
    C = n_embd
    return {
        "ln1_g": jnp.ones((C,), jnp.float32),
        "ln1_b": jnp.zeros((C,), jnp.float32),
        "w_qkv": s * jax.random.normal(ks[0], (C, 3 * C), jnp.float32),
        "b_qkv": s * jax.random.normal(ks[1], (3 * C,), jnp.float32),
        "w_proj": s * jax.random.normal(ks[2], (C, C), jnp.float32),
        "b_proj": s * jax.random.normal(ks[3], (C,), jnp.float32),
        "ln2_g": jnp.ones((C,), jnp.float32),
        "ln2_b": jnp.zeros((C,), jnp.float32),
        "w_fc": s * jax.random.normal(ks[4], (C, 4 * C), jnp.float32),
        "b_fc": s * jax.random.normal(ks[5], (4 * C,), jnp.float32),
        "w_fc2": s * jax.random.normal(ks[6], (4 * C, C), jnp.float32),
        "b_fc2": s * jax.random.normal(ks[7], (C,), jnp.float32),
    }


# ------------------------------ pure-JAX ref --------------------------------

def block_ref(x, p, n_head):
    def ln(v, g, b, eps=1e-5):
        m = v.mean(-1, keepdims=True)
        var = ((v - m) ** 2).mean(-1, keepdims=True)
        return (v - m) / jnp.sqrt(var + eps) * g + b

    B, T, C = x.shape
    hd = C // n_head
    xn = ln(x, p["ln1_g"], p["ln1_b"])
    qkv = xn @ p["w_qkv"] + p["b_qkv"]
    q, k, v = jnp.split(qkv, 3, axis=-1)
    q = q.reshape(B, T, n_head, hd).transpose(0, 2, 1, 3)
    k = k.reshape(B, T, n_head, hd).transpose(0, 2, 1, 3)
    v = v.reshape(B, T, n_head, hd).transpose(0, 2, 1, 3)
    s = (q @ k.transpose(0, 1, 3, 2)) / math.sqrt(hd)
    mask = jnp.tril(jnp.ones((T, T), bool))
    s = jnp.where(mask, s, -jnp.inf)
    a = jax.nn.softmax(s, axis=-1)
    y = (a @ v).transpose(0, 2, 1, 3).reshape(B, T, C)
    x = x + (y @ p["w_proj"] + p["b_proj"])
    xn2 = ln(x, p["ln2_g"], p["ln2_b"])
    c = math.sqrt(2.0 / math.pi)
    h = xn2 @ p["w_fc"] + p["b_fc"]
    h = 0.5 * h * (1.0 + jnp.tanh(c * (h + 0.044715 * h ** 3)))
    return x + (h @ p["w_fc2"] + p["b_fc2"])


# ---------------------------------- main ------------------------------------

if __name__ == "__main__":
    B, T, C, n_head = 2, 8, 32, 4   # block_size >= T

    key = jax.random.PRNGKey(0)
    k_x, k_p = jax.random.split(key)
    x = jax.random.normal(k_x, (B, T, C), jnp.float32)
    params = init_params(k_p, C)

    out = transformer_block(x, params, n_head)
    out = jax.block_until_ready(out)

    ref = block_ref(x, params, n_head)
    assert out.shape == (B, T, C)
    # bf16 matmul inputs (f32 accumulation) + approx reciprocal softmax vs.
    # a full-f32 reference.
    assert jnp.allclose(out, ref, atol=2e-2, rtol=2e-2), "mismatch vs reference"

    print("KERNEL_OK")
</pallas_src>

<mosaic_0001>
module attributes {stable_mosaic.version = 11 : i64} {
  func.func @block_kernel(%arg0: i32, %arg1: memref<1x8x32xf32, #tpu.memory_space<vmem>>, %arg2: memref<1x32xf32, #tpu.memory_space<vmem>>, %arg3: memref<1x32xf32, #tpu.memory_space<vmem>>, %arg4: memref<32x96xbf16, #tpu.memory_space<vmem>>, %arg5: memref<1x96xf32, #tpu.memory_space<vmem>>, %arg6: memref<32x32xbf16, #tpu.memory_space<vmem>>, %arg7: memref<1x32xf32, #tpu.memory_space<vmem>>, %arg8: memref<1x32xf32, #tpu.memory_space<vmem>>, %arg9: memref<1x32xf32, #tpu.memory_space<vmem>>, %arg10: memref<32x128xbf16, #tpu.memory_space<vmem>>, %arg11: memref<1x128xf32, #tpu.memory_space<vmem>>, %arg12: memref<128x32xbf16, #tpu.memory_space<vmem>>, %arg13: memref<1x32xf32, #tpu.memory_space<vmem>>, %arg14: memref<1x8x32xf32, #tpu.memory_space<vmem>>, %arg15: memref<8x96xbf16, #tpu.memory_space<vmem>>, %arg16: memref<4x8x8xbf16, #tpu.memory_space<vmem>>, %arg17: memref<4x8x8xbf16, #tpu.memory_space<vmem>>, %arg18: memref<4x8x8xbf16, #tpu.memory_space<vmem>>, %arg19: memref<8x32xbf16, #tpu.memory_space<vmem>>) attributes {dimension_semantics = [#tpu.dimension_semantics<parallel>], iteration_bounds = array<i64: 2>, scalar_prefetch = 0 : i64, scratch_operands = 5 : i64, tpu.core_type = #tpu.core_type<tc>, window_params = [{transform_indices = @transform_0, window_bounds = array<i64: 1, 8, 32>}, {pipeline_mode = #tpu.pipeline_mode<synchronous>, transform_indices = @transform_1, window_bounds = array<i64: 1, 32>}, {pipeline_mode = #tpu.pipeline_mode<synchronous>, transform_indices = @transform_2, window_bounds = array<i64: 1, 32>}, {pipeline_mode = #tpu.pipeline_mode<synchronous>, transform_indices = @transform_3, window_bounds = array<i64: 32, 96>}, {pipeline_mode = #tpu.pipeline_mode<synchronous>, transform_indices = @transform_4, window_bounds = array<i64: 1, 96>}, {pipeline_mode = #tpu.pipeline_mode<synchronous>, transform_indices = @transform_5, window_bounds = array<i64: 32, 32>}, {pipeline_mode = #tpu.pipeline_mode<synchronous>, transform_indices = @transform_6, window_bounds = array<i64: 1, 32>}, {pipeline_mode = #tpu.pipeline_mode<synchronous>, transform_indices = @transform_7, window_bounds = array<i64: 1, 32>}, {pipeline_mode = #tpu.pipeline_mode<synchronous>, transform_indices = @transform_8, window_bounds = array<i64: 1, 32>}, {pipeline_mode = #tpu.pipeline_mode<synchronous>, transform_indices = @transform_9, window_bounds = array<i64: 32, 128>}, {pipeline_mode = #tpu.pipeline_mode<synchronous>, transform_indices = @transform_10, window_bounds = array<i64: 1, 128>}, {pipeline_mode = #tpu.pipeline_mode<synchronous>, transform_indices = @transform_11, window_bounds = array<i64: 128, 32>}, {pipeline_mode = #tpu.pipeline_mode<synchronous>, transform_indices = @transform_12, window_bounds = array<i64: 1, 32>}, {transform_indices = @transform_13, window_bounds = array<i64: 1, 8, 32>}]} {
    %0 = tpu.iota {dimensions = array<i32: 0>} : vector<8x8xi32>
    %1 = tpu.iota {dimensions = array<i32: 1>} : vector<8x8xi32>
    %2 = arith.cmpi sle, %1, %0 : vector<8x8xi32>
    %cst = arith.constant 0.000000e+00 : f32
    %cst_0 = arith.constant -1.000000e+30 : f32
    %3 = vector.broadcast %cst : f32 to vector<8x8xf32>
    %4 = vector.broadcast %cst_0 : f32 to vector<8x8xf32>
    %5 = arith.select %2, %3, %4 : vector<8x8xi1>, vector<8x8xf32>
    %c0 = arith.constant 0 : index
    %c0_1 = arith.constant 0 : index
    %c0_2 = arith.constant 0 : index
    %6 = vector.load %arg1[%c0, %c0_1, %c0_2] : memref<1x8x32xf32, #tpu.memory_space<vmem>>, vector<1x8x32xf32>
    %7 = vector.shape_cast %6 : vector<1x8x32xf32> to vector<8x32xf32>
    %c0_3 = arith.constant 0 : index
    %c0_4 = arith.constant 0 : index
    %8 = vector.load %arg2[%c0_3, %c0_4] : memref<1x32xf32, #tpu.memory_space<vmem>>, vector<1x32xf32>
    %9 = vector.shape_cast %8 : vector<1x32xf32> to vector<32xf32>
    %c0_5 = arith.constant 0 : index
    %c0_6 = arith.constant 0 : index
    %10 = vector.load %arg3[%c0_5, %c0_6] : memref<1x32xf32, #tpu.memory_space<vmem>>, vector<1x32xf32>
    %11 = vector.shape_cast %10 : vector<1x32xf32> to vector<32xf32>
    %cst_7 = arith.constant dense<0.000000e+00> : vector<8xf32>
    %12 = vector.multi_reduction <add>, %7, %cst_7 [1] : vector<8x32xf32> to vector<8xf32>
    %13 = vector.shape_cast %12 : vector<8xf32> to vector<8x1xf32>
    %cst_8 = arith.constant 3.200000e+01 : f32
    %14 = vector.broadcast %cst_8 : f32 to vector<8x1xf32>
    %15 = arith.divf %13, %14 : vector<8x1xf32>
    %16 = vector.broadcast %15 : vector<8x1xf32> to vector<8x32xf32>
    %17 = arith.subf %7, %16 : vector<8x32xf32>
    %18 = arith.mulf %17, %17 : vector<8x32xf32>
    %cst_9 = arith.constant dense<0.000000e+00> : vector<8xf32>
    %19 = vector.multi_reduction <add>, %18, %cst_9 [1] : vector<8x32xf32> to vector<8xf32>
    %20 = vector.shape_cast %19 : vector<8xf32> to vector<8x1xf32>
    %cst_10 = arith.constant 3.200000e+01 : f32
    %21 = vector.broadcast %cst_10 : f32 to vector<8x1xf32>
    %22 = arith.divf %20, %21 : vector<8x1xf32>
    %23 = vector.broadcast %15 : vector<8x1xf32> to vector<8x32xf32>
    %24 = arith.subf %7, %23 : vector<8x32xf32>
    %cst_11 = arith.constant 9.99999974E-6 : f32
    %25 = vector.broadcast %cst_11 : f32 to vector<8x1xf32>
    %26 = arith.addf %22, %25 : vector<8x1xf32>
    %27 = math.rsqrt %26 : vector<8x1xf32>
    %28 = vector.broadcast %27 : vector<8x1xf32> to vector<8x32xf32>
    %29 = arith.mulf %24, %28 : vector<8x32xf32>
    %30 = vector.shape_cast %9 : vector<32xf32> to vector<1x32xf32>
    %31 = vector.broadcast %30 : vector<1x32xf32> to vector<8x32xf32>
    %32 = arith.mulf %29, %31 : vector<8x32xf32>
    %33 = vector.shape_cast %11 : vector<32xf32> to vector<1x32xf32>
    %34 = vector.broadcast %33 : vector<1x32xf32> to vector<8x32xf32>
    %35 = arith.addf %32, %34 : vector<8x32xf32>
    %36 = arith.truncf %35 : vector<8x32xf32> to vector<8x32xbf16>
    %c0_12 = arith.constant 0 : index
    %c0_13 = arith.constant 0 : index
    %37 = vector.load %arg4[%c0_12, %c0_13] : memref<32x96xbf16, #tpu.memory_space<vmem>>, vector<32x96xbf16>
    %cst_14 = arith.constant dense<0.000000e+00> : vector<8x96xf32>
    %38 = tpu.matmul %36, %37, %cst_14 {dimension_numbers = #tpu.dot_dimension_numbers<[1], [0], [0], [1], [0, 0, 1, 1], [], []>} : vector<8x32xbf16>, vector<32x96xbf16>, vector<8x96xf32> -> vector<8x96xf32>
    %c0_15 = arith.constant 0 : index
    %c0_16 = arith.constant 0 : index
    %39 = vector.load %arg5[%c0_15, %c0_16] : memref<1x96xf32, #tpu.memory_space<vmem>>, vector<1x96xf32>
    %40 = vector.shape_cast %39 : vector<1x96xf32> to vector<96xf32>
    %41 = vector.shape_cast %40 : vector<96xf32> to vector<1x96xf32>
    %42 = vector.broadcast %41 : vector<1x96xf32> to vector<8x96xf32>
    %43 = arith.addf %38, %42 : vector<8x96xf32>
    %44 = arith.truncf %43 : vector<8x96xf32> to vector<8x96xbf16>
    %c0_17 = arith.constant 0 : index
    %c0_18 = arith.constant 0 : index
    %45 = vector.load %arg15[%c0_17, %c0_18] : memref<8x96xbf16, #tpu.memory_space<vmem>>, vector<8x96xbf16>
    tpu.vector_store %arg15[%c0_17, %c0_18], %44 {strides = array<i32>} : memref<8x96xbf16, #tpu.memory_space<vmem>>, vector<8x96xbf16>,
    %c0_19 = arith.constant 0 : index
    %c0_20 = arith.constant 0 : index
    %46 = vector.load %arg15[%c0_19, %c0_20] : memref<8x96xbf16, #tpu.memory_space<vmem>>, vector<8x8xbf16>
    %cst_21 = arith.constant 3.535160e-01 : bf16
    %47 = vector.broadcast %cst_21 : bf16 to vector<8x8xbf16>
    %48 = arith.mulf %46, %47 : vector<8x8xbf16>
    %c0_22 = arith.constant 0 : index
    %c0_23 = arith.constant 0 : index
    %c0_24 = arith.constant 0 : index
    %49 = vector.load %arg16[%c0_22, %c0_23, %c0_24] : memref<4x8x8xbf16, #tpu.memory_space<vmem>>, vector<1x8x8xbf16>
    %50 = vector.shape_cast %49 : vector<1x8x8xbf16> to vector<8x8xbf16>
    %51 = vector.shape_cast %48 : vector<8x8xbf16> to vector<1x8x8xbf16>
    tpu.vector_store %arg16[%c0_22, %c0_23, %c0_24], %51 {strides = array<i32>} : memref<4x8x8xbf16, #tpu.memory_space<vmem>>, vector<1x8x8xbf16>,
    %c0_25 = arith.constant 0 : index
    %c32 = arith.constant 32 : index
    %52 = vector.load %arg15[%c0_25, %c32] : memref<8x96xbf16, #tpu.memory_space<vmem>>, vector<8x8xbf16>
    %c0_26 = arith.constant 0 : index
    %c0_27 = arith.constant 0 : index
    %c0_28 = arith.constant 0 : index
    %53 = vector.load %arg17[%c0_26, %c0_27, %c0_28] : memref<4x8x8xbf16, #tpu.memory_space<vmem>>, vector<1x8x8xbf16>
    %54 = vector.shape_cast %53 : vector<1x8x8xbf16> to vector<8x8xbf16>
    %55 = vector.shape_cast %52 : vector<8x8xbf16> to vector<1x8x8xbf16>
    tpu.vector_store %arg17[%c0_26, %c0_27, %c0_28], %55 {strides = array<i32>} : memref<4x8x8xbf16, #tpu.memory_space<vmem>>, vector<1x8x8xbf16>,
    %c0_29 = arith.constant 0 : index
    %c64 = arith.constant 64 : index
    %56 = vector.load %arg15[%c0_29, %c64] : memref<8x96xbf16, #tpu.memory_space<vmem>>, vector<8x8xbf16>
    %c0_30 = arith.constant 0 : index
    %c0_31 = arith.constant 0 : index
    %c0_32 = arith.constant 0 : index
    %57 = vector.load %arg18[%c0_30, %c0_31, %c0_32] : memref<4x8x8xbf16, #tpu.memory_space<vmem>>, vector<1x8x8xbf16>
    %58 = vector.shape_cast %57 : vector<1x8x8xbf16> to vector<8x8xbf16>
    %59 = vector.shape_cast %56 : vector<8x8xbf16> to vector<1x8x8xbf16>
    tpu.vector_store %arg18[%c0_30, %c0_31, %c0_32], %59 {strides = array<i32>} : memref<4x8x8xbf16, #tpu.memory_space<vmem>>, vector<1x8x8xbf16>,
    %c0_33 = arith.constant 0 : index
    %c8 = arith.constant 8 : index
    %60 = vector.load %arg15[%c0_33, %c8] : memref<8x96xbf16, #tpu.memory_space<vmem>>, vector<8x8xbf16>
    %cst_34 = arith.constant 3.535160e-01 : bf16
    %61 = vector.broadcast %cst_34 : bf16 to vector<8x8xbf16>
    %62 = arith.mulf %60, %61 : vector<8x8xbf16>
    %c1 = arith.constant 1 : index
    %c0_35 = arith.constant 0 : index
    %c0_36 = arith.constant 0 : index
    %63 = vector.load %arg16[%c1, %c0_35, %c0_36] : memref<4x8x8xbf16, #tpu.memory_space<vmem>>, vector<1x8x8xbf16>
    %64 = vector.shape_cast %63 : vector<1x8x8xbf16> to vector<8x8xbf16>
    %65 = vector.shape_cast %62 : vector<8x8xbf16> to vector<1x8x8xbf16>
    tpu.vector_store %arg16[%c1, %c0_35, %c0_36], %65 {strides = array<i32>} : memref<4x8x8xbf16, #tpu.memory_space<vmem>>, vector<1x8x8xbf16>,
    %c0_37 = arith.constant 0 : index
    %c40 = arith.constant 40 : index
    %66 = vector.load %arg15[%c0_37, %c40] : memref<8x96xbf16, #tpu.memory_space<vmem>>, vector<8x8xbf16>
    %c1_38 = arith.constant 1 : index
    %c0_39 = arith.constant 0 : index
    %c0_40 = arith.constant 0 : index
    %67 = vector.load %arg17[%c1_38, %c0_39, %c0_40] : memref<4x8x8xbf16, #tpu.memory_space<vmem>>, vector<1x8x8xbf16>
    %68 = vector.shape_cast %67 : vector<1x8x8xbf16> to vector<8x8xbf16>
    %69 = vector.shape_cast %66 : vector<8x8xbf16> to vector<1x8x8xbf16>
    tpu.vector_store %arg17[%c1_38, %c0_39, %c0_40], %69 {strides = array<i32>} : memref<4x8x8xbf16, #tpu.memory_space<vmem>>, vector<1x8x8xbf16>,
    %c0_41 = arith.constant 0 : index
    %c72 = arith.constant 72 : index
    %70 = vector.load %arg15[%c0_41, %c72] : memref<8x96xbf16, #tpu.memory_space<vmem>>, vector<8x8xbf16>
    %c1_42 = arith.constant 1 : index
    %c0_43 = arith.constant 0 : index
    %c0_44 = arith.constant 0 : index
    %71 = vector.load %arg18[%c1_42, %c0_43, %c0_44] : memref<4x8x8xbf16, #tpu.memory_space<vmem>>, vector<1x8x8xbf16>
    %72 = vector.shape_cast %71 : vector<1x8x8xbf16> to vector<8x8xbf16>
    %73 = vector.shape_cast %70 : vector<8x8xbf16> to vector<1x8x8xbf16>
    tpu.vector_store %arg18[%c1_42, %c0_43, %c0_44], %73 {strides = array<i32>} : memref<4x8x8xbf16, #tpu.memory_space<vmem>>, vector<1x8x8xbf16>,
    %c0_45 = arith.constant 0 : index
    %c16 = arith.constant 16 : index
    %74 = vector.load %arg15[%c0_45, %c16] : memref<8x96xbf16, #tpu.memory_space<vmem>>, vector<8x8xbf16>
    %cst_46 = arith.constant 3.535160e-01 : bf16
    %75 = vector.broadcast %cst_46 : bf16 to vector<8x8xbf16>
    %76 = arith.mulf %74, %75 : vector<8x8xbf16>
    %c2 = arith.constant 2 : index
    %c0_47 = arith.constant 0 : index
    %c0_48 = arith.constant 0 : index
    %77 = vector.load %arg16[%c2, %c0_47, %c0_48] : memref<4x8x8xbf16, #tpu.memory_space<vmem>>, vector<1x8x8xbf16>
    %78 = vector.shape_cast %77 : vector<1x8x8xbf16> to vector<8x8xbf16>
    %79 = vector.shape_cast %76 : vector<8x8xbf16> to vector<1x8x8xbf16>
    tpu.vector_store %arg16[%c2, %c0_47, %c0_48], %79 {strides = array<i32>} : memref<4x8x8xbf16, #tpu.memory_space<vmem>>, vector<1x8x8xbf16>,
    %c0_49 = arith.constant 0 : index
    %c48 = arith.constant 48 : index
    %80 = vector.load %arg15[%c0_49, %c48] : memref<8x96xbf16, #tpu.memory_space<vmem>>, vector<8x8xbf16>
    %c2_50 = arith.constant 2 : index
    %c0_51 = arith.constant 0 : index
    %c0_52 = arith.constant 0 : index
    %81 = vector.load %arg17[%c2_50, %c0_51, %c0_52] : memref<4x8x8xbf16, #tpu.memory_space<vmem>>, vector<1x8x8xbf16>
    %82 = vector.shape_cast %81 : vector<1x8x8xbf16> to vector<8x8xbf16>
    %83 = vector.shape_cast %80 : vector<8x8xbf16> to vector<1x8x8xbf16>
    tpu.vector_store %arg17[%c2_50, %c0_51, %c0_52], %83 {strides = array<i32>} : memref<4x8x8xbf16, #tpu.memory_space<vmem>>, vector<1x8x8xbf16>,
    %c0_53 = arith.constant 0 : index
    %c80 = arith.constant 80 : index
    %84 = vector.load %arg15[%c0_53, %c80] : memref<8x96xbf16, #tpu.memory_space<vmem>>, vector<8x8xbf16>
    %c2_54 = arith.constant 2 : index
    %c0_55 = arith.constant 0 : index
    %c0_56 = arith.constant 0 : index
    %85 = vector.load %arg18[%c2_54, %c0_55, %c0_56] : memref<4x8x8xbf16, #tpu.memory_space<vmem>>, vector<1x8x8xbf16>
    %86 = vector.shape_cast %85 : vector<1x8x8xbf16> to vector<8x8xbf16>
    %87 = vector.shape_cast %84 : vector<8x8xbf16> to vector<1x8x8xbf16>
    tpu.vector_store %arg18[%c2_54, %c0_55, %c0_56], %87 {strides = array<i32>} : memref<4x8x8xbf16, #tpu.memory_space<vmem>>, vector<1x8x8xbf16>,
    %c0_57 = arith.constant 0 : index
    %c24 = arith.constant 24 : index
    %88 = vector.load %arg15[%c0_57, %c24] : memref<8x96xbf16, #tpu.memory_space<vmem>>, vector<8x8xbf16>
    %cst_58 = arith.constant 3.535160e-01 : bf16
    %89 = vector.broadcast %cst_58 : bf16 to vector<8x8xbf16>
    %90 = arith.mulf %88, %89 : vector<8x8xbf16>
    %c3 = arith.constant 3 : index
    %c0_59 = arith.constant 0 : index
    %c0_60 = arith.constant 0 : index
    %91 = vector.load %arg16[%c3, %c0_59, %c0_60] : memref<4x8x8xbf16, #tpu.memory_space<vmem>>, vector<1x8x8xbf16>
    %92 = vector.shape_cast %91 : vector<1x8x8xbf16> to vector<8x8xbf16>
    %93 = vector.shape_cast %90 : vector<8x8xbf16> to vector<1x8x8xbf16>
    tpu.vector_store %arg16[%c3, %c0_59, %c0_60], %93 {strides = array<i32>} : memref<4x8x8xbf16, #tpu.memory_space<vmem>>, vector<1x8x8xbf16>,
    %c0_61 = arith.constant 0 : index
    %c56 = arith.constant 56 : index
    %94 = vector.load %arg15[%c0_61, %c56] : memref<8x96xbf16, #tpu.memory_space<vmem>>, vector<8x8xbf16>
    %c3_62 = arith.constant 3 : index
    %c0_63 = arith.constant 0 : index
    %c0_64 = arith.constant 0 : index
    %95 = vector.load %arg17[%c3_62, %c0_63, %c0_64] : memref<4x8x8xbf16, #tpu.memory_space<vmem>>, vector<1x8x8xbf16>
    %96 = vector.shape_cast %95 : vector<1x8x8xbf16> to vector<8x8xbf16>
    %97 = vector.shape_cast %94 : vector<8x8xbf16> to vector<1x8x8xbf16>
    tpu.vector_store %arg17[%c3_62, %c0_63, %c0_64], %97 {strides = array<i32>} : memref<4x8x8xbf16, #tpu.memory_space<vmem>>, vector<1x8x8xbf16>,
    %c0_65 = arith.constant 0 : index
    %c88 = arith.constant 88 : index
    %98 = vector.load %arg15[%c0_65, %c88] : memref<8x96xbf16, #tpu.memory_space<vmem>>, vector<8x8xbf16>
    %c3_66 = arith.constant 3 : index
    %c0_67 = arith.constant 0 : index
    %c0_68 = arith.constant 0 : index
    %99 = vector.load %arg18[%c3_66, %c0_67, %c0_68] : memref<4x8x8xbf16, #tpu.memory_space<vmem>>, vector<1x8x8xbf16>
    %100 = vector.shape_cast %99 : vector<1x8x8xbf16> to vector<8x8xbf16>
    %101 = vector.shape_cast %98 : vector<8x8xbf16> to vector<1x8x8xbf16>
    tpu.vector_store %arg18[%c3_66, %c0_67, %c0_68], %101 {strides = array<i32>} : memref<4x8x8xbf16, #tpu.memory_space<vmem>>, vector<1x8x8xbf16>,
    %c0_69 = arith.constant 0 : index
    %c0_70 = arith.constant 0 : index
    %c0_71 = arith.constant 0 : index
    %102 = vector.load %arg16[%c0_69, %c0_70, %c0_71] : memref<4x8x8xbf16, #tpu.memory_space<vmem>>, vector<4x8x8xbf16>
    %c0_72 = arith.constant 0 : index
    %c0_73 = arith.constant 0 : index
    %c0_74 = arith.constant 0 : index
    %103 = vector.load %arg17[%c0_72, %c0_73, %c0_74] : memref<4x8x8xbf16, #tpu.memory_space<vmem>>, vector<4x8x8xbf16>
    %c0_75 = arith.constant 0 : index
    %c0_76 = arith.constant 0 : index
    %c0_77 = arith.constant 0 : index
    %104 = vector.load %arg18[%c0_75, %c0_76, %c0_77] : memref<4x8x8xbf16, #tpu.memory_space<vmem>>, vector<4x8x8xbf16>
    "tpu.trace_start"() <{level = 10 : i32, message = "gtd,gsd->gts"}> : () -> ()
    %cst_78 = arith.constant dense<0.000000e+00> : vector<4x8x8xf32>
    %105 = tpu.matmul %102, %103, %cst_78 {dimension_numbers = #tpu.dot_dimension_numbers<[2], [2], [1], [1], [0, 0, 0, 1, 1, 1], [0], [0]>} : vector<4x8x8xbf16>, vector<4x8x8xbf16>, vector<4x8x8xf32> -> vector<4x8x8xf32>
    "tpu.trace_stop"() : () -> ()
    %106 = vector.shape_cast %5 : vector<8x8xf32> to vector<1x8x8xf32>
    %107 = vector.broadcast %106 : vector<1x8x8xf32> to vector<4x8x8xf32>
    %108 = arith.addf %105, %107 : vector<4x8x8xf32>
    %cst_79 = arith.constant dense<0xFF800000> : vector<4x8xf32>
    %109 = vector.multi_reduction <maximumf>, %108, %cst_79 [2] : vector<4x8x8xf32> to vector<4x8xf32>
    %110 = vector.shape_cast %109 : vector<4x8xf32> to vector<4x8x1xf32>
    %111 = vector.broadcast %110 : vector<4x8x1xf32> to vector<4x8x8xf32>
    %112 = arith.subf %108, %111 : vector<4x8x8xf32>
    %113 = math.exp %112 : vector<4x8x8xf32>
    %cst_80 = arith.constant dense<0.000000e+00> : vector<4x8xf32>
    %114 = vector.multi_reduction <add>, %113, %cst_80 [2] : vector<4x8x8xf32> to vector<4x8xf32>
    %115 = vector.shape_cast %114 : vector<4x8xf32> to vector<4x8x1xf32>
    %116 = tpu.reciprocal %115 {approx = true} : vector<4x8x1xf32> -> vector<4x8x1xf32>
    %117 = vector.broadcast %116 : vector<4x8x1xf32> to vector<4x8x8xf32>
    %118 = arith.mulf %113, %117 : vector<4x8x8xf32>
    %119 = arith.truncf %118 : vector<4x8x8xf32> to vector<4x8x8xbf16>
    "tpu.trace_start"() <{level = 10 : i32, message = "gts,gsd->gtd"}> : () -> ()
    %cst_81 = arith.constant dense<0.000000e+00> : vector<4x8x8xf32>
    %120 = tpu.matmul %119, %104, %cst_81 {dimension_numbers = #tpu.dot_dimension_numbers<[2], [1], [1], [2], [0, 0, 0, 1, 1, 2], [0], [0]>} : vector<4x8x8xbf16>, vector<4x8x8xbf16>, vector<4x8x8xf32> -> vector<4x8x8xf32>
    "tpu.trace_stop"() : () -> ()
    %121 = vector.extract_strided_slice %120 {offsets = [0, 0, 0], sizes = [1, 8, 8], strides = [1, 1, 1]} : vector<4x8x8xf32> to vector<1x8x8xf32>
    %122 = vector.shape_cast %121 : vector<1x8x8xf32> to vector<8x8xf32>
    %123 = arith.truncf %122 : vector<8x8xf32> to vector<8x8xbf16>
    %c0_82 = arith.constant 0 : index
    %c0_83 = arith.constant 0 : index
    %124 = vector.load %arg19[%c0_82, %c0_83] : memref<8x32xbf16, #tpu.memory_space<vmem>>, vector<8x8xbf16>
    tpu.vector_store %arg19[%c0_82, %c0_83], %123 {strides = array<i32>} : memref<8x32xbf16, #tpu.memory_space<vmem>>, vector<8x8xbf16>,
    %125 = vector.extract_strided_slice %120 {offsets = [1, 0, 0], sizes = [1, 8, 8], strides = [1, 1, 1]} : vector<4x8x8xf32> to vector<1x8x8xf32>
    %126 = vector.shape_cast %125 : vector<1x8x8xf32> to vector<8x8xf32>
    %127 = arith.truncf %126 : vector<8x8xf32> to vector<8x8xbf16>
    %c0_84 = arith.constant 0 : index
    %c8_85 = arith.constant 8 : index
    %128 = vector.load %arg19[%c0_84, %c8_85] : memref<8x32xbf16, #tpu.memory_space<vmem>>, vector<8x8xbf16>
    tpu.vector_store %arg19[%c0_84, %c8_85], %127 {strides = array<i32>} : memref<8x32xbf16, #tpu.memory_space<vmem>>, vector<8x8xbf16>,
    %129 = vector.extract_strided_slice %120 {offsets = [2, 0, 0], sizes = [1, 8, 8], strides = [1, 1, 1]} : vector<4x8x8xf32> to vector<1x8x8xf32>
    %130 = vector.shape_cast %129 : vector<1x8x8xf32> to vector<8x8xf32>
    %131 = arith.truncf %130 : vector<8x8xf32> to vector<8x8xbf16>
    %c0_86 = arith.constant 0 : index
    %c16_87 = arith.constant 16 : index
    %132 = vector.load %arg19[%c0_86, %c16_87] : memref<8x32xbf16, #tpu.memory_space<vmem>>, vector<8x8xbf16>
    tpu.vector_store %arg19[%c0_86, %c16_87], %131 {strides = array<i32>} : memref<8x32xbf16, #tpu.memory_space<vmem>>, vector<8x8xbf16>,
    %133 = vector.extract_strided_slice %120 {offsets = [3, 0, 0], sizes = [1, 8, 8], strides = [1, 1, 1]} : vector<4x8x8xf32> to vector<1x8x8xf32>
    %134 = vector.shape_cast %133 : vector<1x8x8xf32> to vector<8x8xf32>
    %135 = arith.truncf %134 : vector<8x8xf32> to vector<8x8xbf16>
    %c0_88 = arith.constant 0 : index
    %c24_89 = arith.constant 24 : index
    %136 = vector.load %arg19[%c0_88, %c24_89] : memref<8x32xbf16, #tpu.memory_space<vmem>>, vector<8x8xbf16>
    tpu.vector_store %arg19[%c0_88, %c24_89], %135 {strides = array<i32>} : memref<8x32xbf16, #tpu.memory_space<vmem>>, vector<8x8xbf16>,
    %c0_90 = arith.constant 0 : index
    %c0_91 = arith.constant 0 : index
    %c0_92 = arith.constant 0 : index
    %137 = vector.load %arg1[%c0_90, %c0_91, %c0_92] : memref<1x8x32xf32, #tpu.memory_space<vmem>>, vector<1x8x32xf32>
    %138 = vector.shape_cast %137 : vector<1x8x32xf32> to vector<8x32xf32>
    %c0_93 = arith.constant 0 : index
    %c0_94 = arith.constant 0 : index
    %139 = vector.load %arg19[%c0_93, %c0_94] : memref<8x32xbf16, #tpu.memory_space<vmem>>, vector<8x32xbf16>
    %c0_95 = arith.constant 0 : index
    %c0_96 = arith.constant 0 : index
    %140 = vector.load %arg6[%c0_95, %c0_96] : memref<32x32xbf16, #tpu.memory_space<vmem>>, vector<32x32xbf16>
    %cst_97 = arith.constant dense<0.000000e+00> : vector<8x32xf32>
    %141 = tpu.matmul %139, %140, %cst_97 {dimension_numbers = #tpu.dot_dimension_numbers<[1], [0], [0], [1], [0, 0, 1, 1], [], []>} : vector<8x32xbf16>, vector<32x32xbf16>, vector<8x32xf32> -> vector<8x32xf32>
    %142 = arith.addf %138, %141 : vector<8x32xf32>
    %c0_98 = arith.constant 0 : index
    %c0_99 = arith.constant 0 : index
    %143 = vector.load %arg7[%c0_98, %c0_99] : memref<1x32xf32, #tpu.memory_space<vmem>>, vector<1x32xf32>
    %144 = vector.shape_cast %143 : vector<1x32xf32> to vector<32xf32>
    %145 = vector.shape_cast %144 : vector<32xf32> to vector<1x32xf32>
    %146 = vector.broadcast %145 : vector<1x32xf32> to vector<8x32xf32>
    %147 = arith.addf %142, %146 : vector<8x32xf32>
    %c0_100 = arith.constant 0 : index
    %c0_101 = arith.constant 0 : index
    %c0_102 = arith.constant 0 : index
    %148 = vector.load %arg14[%c0_100, %c0_101, %c0_102] : memref<1x8x32xf32, #tpu.memory_space<vmem>>, vector<1x8x32xf32>
    %149 = vector.shape_cast %148 : vector<1x8x32xf32> to vector<8x32xf32>
    %150 = vector.shape_cast %147 : vector<8x32xf32> to vector<1x8x32xf32>
    tpu.vector_store %arg14[%c0_100, %c0_101, %c0_102], %150 {strides = array<i32>} : memref<1x8x32xf32, #tpu.memory_space<vmem>>, vector<1x8x32xf32>,
    %c0_103 = arith.constant 0 : index
    %c0_104 = arith.constant 0 : index
    %c0_105 = arith.constant 0 : index
    %151 = vector.load %arg14[%c0_103, %c0_104, %c0_105] : memref<1x8x32xf32, #tpu.memory_space<vmem>>, vector<1x8x32xf32>
    %152 = vector.shape_cast %151 : vector<1x8x32xf32> to vector<8x32xf32>
    %c0_106 = arith.constant 0 : index
    %c0_107 = arith.constant 0 : index
    %153 = vector.load %arg8[%c0_106, %c0_107] : memref<1x32xf32, #tpu.memory_space<vmem>>, vector<1x32xf32>
    %154 = vector.shape_cast %153 : vector<1x32xf32> to vector<32xf32>
    %c0_108 = arith.constant 0 : index
    %c0_109 = arith.constant 0 : index
    %155 = vector.load %arg9[%c0_108, %c0_109] : memref<1x32xf32, #tpu.memory_space<vmem>>, vector<1x32xf32>
    %156 = vector.shape_cast %155 : vector<1x32xf32> to vector<32xf32>
    %cst_110 = arith.constant dense<0.000000e+00> : vector<8xf32>
    %157 = vector.multi_reduction <add>, %152, %cst_110 [1] : vector<8x32xf32> to vector<8xf32>
    %158 = vector.shape_cast %157 : vector<8xf32> to vector<8x1xf32>
    %cst_111 = arith.constant 3.200000e+01 : f32
    %159 = vector.broadcast %cst_111 : f32 to vector<8x1xf32>
    %160 = arith.divf %158, %159 : vector<8x1xf32>
    %161 = vector.broadcast %160 : vector<8x1xf32> to vector<8x32xf32>
    %162 = arith.subf %152, %161 : vector<8x32xf32>
    %163 = arith.mulf %162, %162 : vector<8x32xf32>
    %cst_112 = arith.constant dense<0.000000e+00> : vector<8xf32>
    %164 = vector.multi_reduction <add>, %163, %cst_112 [1] : vector<8x32xf32> to vector<8xf32>
    %165 = vector.shape_cast %164 : vector<8xf32> to vector<8x1xf32>
    %cst_113 = arith.constant 3.200000e+01 : f32
    %166 = vector.broadcast %cst_113 : f32 to vector<8x1xf32>
    %167 = arith.divf %165, %166 : vector<8x1xf32>
    %168 = vector.broadcast %160 : vector<8x1xf32> to vector<8x32xf32>
    %169 = arith.subf %152, %168 : vector<8x32xf32>
    %cst_114 = arith.constant 9.99999974E-6 : f32
    %170 = vector.broadcast %cst_114 : f32 to vector<8x1xf32>
    %171 = arith.addf %167, %170 : vector<8x1xf32>
    %172 = math.rsqrt %171 : vector<8x1xf32>
    %173 = vector.broadcast %172 : vector<8x1xf32> to vector<8x32xf32>
    %174 = arith.mulf %169, %173 : vector<8x32xf32>
    %175 = vector.shape_cast %154 : vector<32xf32> to vector<1x32xf32>
    %176 = vector.broadcast %175 : vector<1x32xf32> to vector<8x32xf32>
    %177 = arith.mulf %174, %176 : vector<8x32xf32>
    %178 = vector.shape_cast %156 : vector<32xf32> to vector<1x32xf32>
    %179 = vector.broadcast %178 : vector<1x32xf32> to vector<8x32xf32>
    %180 = arith.addf %177, %179 : vector<8x32xf32>
    %181 = arith.truncf %180 : vector<8x32xf32> to vector<8x32xbf16>
    %c0_115 = arith.constant 0 : index
    %c0_116 = arith.constant 0 : index
    %182 = vector.load %arg10[%c0_115, %c0_116] : memref<32x128xbf16, #tpu.memory_space<vmem>>, vector<32x128xbf16>
    %cst_117 = arith.constant dense<0.000000e+00> : vector<8x128xf32>
    %183 = tpu.matmul %181, %182, %cst_117 {dimension_numbers = #tpu.dot_dimension_numbers<[1], [0], [0], [1], [0, 0, 1, 1], [], []>} : vector<8x32xbf16>, vector<32x128xbf16>, vector<8x128xf32> -> vector<8x128xf32>
    %c0_118 = arith.constant 0 : index
    %c0_119 = arith.constant 0 : index
    %184 = vector.load %arg11[%c0_118, %c0_119] : memref<1x128xf32, #tpu.memory_space<vmem>>, vector<1x128xf32>
    %185 = vector.shape_cast %184 : vector<1x128xf32> to vector<128xf32>
    %186 = vector.shape_cast %185 : vector<128xf32> to vector<1x128xf32>
    %187 = vector.broadcast %186 : vector<1x128xf32> to vector<8x128xf32>
    %188 = arith.addf %183, %187 : vector<8x128xf32>
    %cst_120 = arith.constant 5.000000e-01 : f32
    %189 = vector.broadcast %cst_120 : f32 to vector<8x128xf32>
    %190 = arith.mulf %189, %188 : vector<8x128xf32>
    %cst_121 = arith.constant 4.471500e-02 : f32
    %191 = vector.broadcast %cst_121 : f32 to vector<8x128xf32>
    %192 = arith.mulf %191, %188 : vector<8x128xf32>
    %193 = arith.mulf %192, %188 : vector<8x128xf32>
    %194 = arith.mulf %193, %188 : vector<8x128xf32>
    %195 = arith.addf %188, %194 : vector<8x128xf32>
    %cst_122 = arith.constant 0.797884583 : f32
    %196 = vector.broadcast %cst_122 : f32 to vector<8x128xf32>
    %197 = arith.mulf %196, %195 : vector<8x128xf32>
    %198 = math.tanh %197 : vector<8x128xf32>
    %cst_123 = arith.constant 1.000000e+00 : f32
    %199 = vector.broadcast %cst_123 : f32 to vector<8x128xf32>
    %200 = arith.addf %199, %198 : vector<8x128xf32>
    %201 = arith.mulf %190, %200 : vector<8x128xf32>
    %c0_124 = arith.constant 0 : index
    %c0_125 = arith.constant 0 : index
    %c0_126 = arith.constant 0 : index
    %202 = vector.load %arg14[%c0_124, %c0_125, %c0_126] : memref<1x8x32xf32, #tpu.memory_space<vmem>>, vector<1x8x32xf32>
    %203 = vector.shape_cast %202 : vector<1x8x32xf32> to vector<8x32xf32>
    %204 = arith.truncf %201 : vector<8x128xf32> to vector<8x128xbf16>
    %c0_127 = arith.constant 0 : index
    %c0_128 = arith.constant 0 : index
    %205 = vector.load %arg12[%c0_127, %c0_128] : memref<128x32xbf16, #tpu.memory_space<vmem>>, vector<128x32xbf16>
    %cst_129 = arith.constant dense<0.000000e+00> : vector<8x32xf32>
    %206 = tpu.matmul %204, %205, %cst_129 {dimension_numbers = #tpu.dot_dimension_numbers<[1], [0], [0], [1], [0, 0, 1, 1], [], []>} : vector<8x128xbf16>, vector<128x32xbf16>, vector<8x32xf32> -> vector<8x32xf32>
    %c0_130 = arith.constant 0 : index
    %c0_131 = arith.constant 0 : index
    %207 = vector.load %arg13[%c0_130, %c0_131] : memref<1x32xf32, #tpu.memory_space<vmem>>, vector<1x32xf32>
    %208 = vector.shape_cast %207 : vector<1x32xf32> to vector<32xf32>
    %209 = vector.shape_cast %208 : vector<32xf32> to vector<1x32xf32>
    %210 = vector.broadcast %209 : vector<1x32xf32> to vector<8x32xf32>
    %211 = arith.addf %206, %210 : vector<8x32xf32>
    %212 = arith.addf %203, %211 : vector<8x32xf32>
    %c0_132 = arith.constant 0 : index
    %c0_133 = arith.constant 0 : index
    %c0_134 = arith.constant 0 : index
    %213 = vector.load %arg14[%c0_132, %c0_133, %c0_134] : memref<1x8x32xf32, #tpu.memory_space<vmem>>, vector<1x8x32xf32>
    %214 = vector.shape_cast %213 : vector<1x8x32xf32> to vector<8x32xf32>
    %215 = vector.shape_cast %212 : vector<8x32xf32> to vector<1x8x32xf32>
    tpu.vector_store %arg14[%c0_132, %c0_133, %c0_134], %215 {strides = array<i32>} : memref<1x8x32xf32, #tpu.memory_space<vmem>>, vector<1x8x32xf32>,
    return
  }
  func.func @transform_0(%arg0: i32) -> (i32, i32, i32) {
    %c0_i32 = arith.constant 0 : i32
    %c0_i32_0 = arith.constant 0 : i32
    %c0_i32_1 = arith.constant 0 : i32
    return %arg0, %c0_i32, %c0_i32_0 : i32, i32, i32
  }
  func.func @transform_1(%arg0: i32) -> (i32, i32) {
    %c0_i32 = arith.constant 0 : i32
    %c0_i32_0 = arith.constant 0 : i32
    %c0_i32_1 = arith.constant 0 : i32
    return %c0_i32, %c0_i32_0 : i32, i32
  }
  func.func @transform_2(%arg0: i32) -> (i32, i32) {
    %c0_i32 = arith.constant 0 : i32
    %c0_i32_0 = arith.constant 0 : i32
    %c0_i32_1 = arith.constant 0 : i32
    return %c0_i32, %c0_i32_0 : i32, i32
  }
  func.func @transform_3(%arg0: i32) -> (i32, i32) {
    %c0_i32 = arith.constant 0 : i32
    %c0_i32_0 = arith.constant 0 : i32
    %c0_i32_1 = arith.constant 0 : i32
    return %c0_i32, %c0_i32_0 : i32, i32
  }
  func.func @transform_4(%arg0: i32) -> (i32, i32) {
    %c0_i32 = arith.constant 0 : i32
    %c0_i32_0 = arith.constant 0 : i32
    %c0_i32_1 = arith.constant 0 : i32
    return %c0_i32, %c0_i32_0 : i32, i32
  }
  func.func @transform_5(%arg0: i32) -> (i32, i32) {
    %c0_i32 = arith.constant 0 : i32
    %c0_i32_0 = arith.constant 0 : i32
    %c0_i32_1 = arith.constant 0 : i32
    return %c0_i32, %c0_i32_0 : i32, i32
  }
  func.func @transform_6(%arg0: i32) -> (i32, i32) {
    %c0_i32 = arith.constant 0 : i32
    %c0_i32_0 = arith.constant 0 : i32
    %c0_i32_1 = arith.constant 0 : i32
    return %c0_i32, %c0_i32_0 : i32, i32
  }
  func.func @transform_7(%arg0: i32) -> (i32, i32) {
    %c0_i32 = arith.constant 0 : i32
    %c0_i32_0 = arith.constant 0 : i32
    %c0_i32_1 = arith.constant 0 : i32
    return %c0_i32, %c0_i32_0 : i32, i32
  }
  func.func @transform_8(%arg0: i32) -> (i32, i32) {
    %c0_i32 = arith.constant 0 : i32
    %c0_i32_0 = arith.constant 0 : i32
    %c0_i32_1 = arith.constant 0 : i32
    return %c0_i32, %c0_i32_0 : i32, i32
  }
  func.func @transform_9(%arg0: i32) -> (i32, i32) {
    %c0_i32 = arith.constant 0 : i32
    %c0_i32_0 = arith.constant 0 : i32
    %c0_i32_1 = arith.constant 0 : i32
    return %c0_i32, %c0_i32_0 : i32, i32
  }
  func.func @transform_10(%arg0: i32) -> (i32, i32) {
    %c0_i32 = arith.constant 0 : i32
    %c0_i32_0 = arith.constant 0 : i32
    %c0_i32_1 = arith.constant 0 : i32
    return %c0_i32, %c0_i32_0 : i32, i32
  }
  func.func @transform_11(%arg0: i32) -> (i32, i32) {
    %c0_i32 = arith.constant 0 : i32
    %c0_i32_0 = arith.constant 0 : i32
    %c0_i32_1 = arith.constant 0 : i32
    return %c0_i32, %c0_i32_0 : i32, i32
  }
  func.func @transform_12(%arg0: i32) -> (i32, i32) {
    %c0_i32 = arith.constant 0 : i32
    %c0_i32_0 = arith.constant 0 : i32
    %c0_i32_1 = arith.constant 0 : i32
    return %c0_i32, %c0_i32_0 : i32, i32
  }
  func.func @transform_13(%arg0: i32) -> (i32, i32, i32) {
    %c0_i32 = arith.constant 0 : i32
    %c0_i32_0 = arith.constant 0 : i32
    %c0_i32_1 = arith.constant 0 : i32
    return %arg0, %c0_i32, %c0_i32_0 : i32, i32, i32
  }
}

</mosaic_0001>

<llo_original>
// kernel: tpu_custom_call.1
$region0: #{tpu_custom_call.1}
  #allocation0 [shape = 'u32[]', space=smem, size = 0x4, offset = 0x4, fixed_abs, tag = 'smem constant byte address 0x4 - core index']
  #allocation1 [shape = 'u32[144,128]{1,0:T(1,128)}', space=vmem, size = 0x12000, scoped, tag = 'internal scratch']
  #allocation2 [shape = 'bf16[8,96]{1,0:T(8,128)(2,1)}', space=vmem, size = 0x800, scoped, tag = 'scratch operand']
  #allocation3 [shape = 'bf16[4,8,8]{2,1,0:T(8,128)(2,1)}', space=vmem, size = 0x2000, scoped, tag = 'scratch operand']
  #allocation4 [shape = 'bf16[4,8,8]{2,1,0:T(8,128)(2,1)}', space=vmem, size = 0x2000, scoped, tag = 'scratch operand']
  #allocation5 [shape = 'bf16[4,8,8]{2,1,0:T(8,128)(2,1)}', space=vmem, size = 0x2000, scoped, tag = 'scratch operand']
  #allocation6 [shape = 'bf16[8,32]{1,0:T(8,128)(2,1)}', space=vmem, size = 0x800, scoped, tag = 'scratch operand']
  %s0 = inlined_call_operand.hbm [shape: f32[2,8,32], index: 0, kind: input, shape index: {}]
  %s1 = inlined_call_operand.hbm [shape: f32[1,32], index: 1, kind: input, shape index: {}]
  %s2 = inlined_call_operand.hbm [shape: f32[1,32], index: 2, kind: input, shape index: {}]
  %s3 = inlined_call_operand.hbm [shape: bf16[32,96], index: 3, kind: input, shape index: {}]
  %s4 = inlined_call_operand.hbm [shape: f32[1,96], index: 4, kind: input, shape index: {}]
  %s5 = inlined_call_operand.hbm [shape: bf16[32,32], index: 5, kind: input, shape index: {}]
  %s6 = inlined_call_operand.hbm [shape: f32[1,32], index: 6, kind: input, shape index: {}]
  %s7 = inlined_call_operand.hbm [shape: f32[1,32], index: 7, kind: input, shape index: {}]
  %s8 = inlined_call_operand.hbm [shape: f32[1,32], index: 8, kind: input, shape index: {}]
  %s9 = inlined_call_operand.hbm [shape: bf16[32,128], index: 9, kind: input, shape index: {}]
  %s10 = inlined_call_operand.hbm [shape: f32[1,128], index: 10, kind: input, shape index: {}]
  %s11 = inlined_call_operand.hbm [shape: bf16[128,32], index: 11, kind: input, shape index: {}]
  %s12 = inlined_call_operand.hbm [shape: f32[1,32], index: 12, kind: input, shape index: {}]
  %s13 = inlined_call_operand.hbm [shape: f32[2,8,32], index: 13, kind: output, shape index: {}]
  %s14 = sld [smem:[#allocation0]]
  $region137: #{tpu_custom_call.1} parent=0
    _
  %s16 = ssub.s32 1, %s14
  %s17 = scalar_select 0, %s16, %s14
  $region1: #{tpu_custom_call.1} parent=0
    #allocation7 [shape = 'u8[8192]{0}', space=vmem, size = 0x2000, scoped, tag = 'input window, operand 0']
    #allocation8 [shape = 's32[2]{0}', space=sflag, size = 0x8, scoped, tag = 'scoped memory for tpu_custom_call.1']
    #allocation9 [shape = 's32[2]{0}', space=sflag, size = 0x8, scoped, tag = 'scoped memory for tpu_custom_call.1']
    #allocation10 [shape = 'u8[512]{0}', space=vmem, size = 0x400, scoped, tag = 'input window, operand 1, single buffered']
    #allocation11 [shape = 's32[1]{0}', space=sflag, size = 0x4, scoped, tag = 'scoped memory for tpu_custom_call.1']
    #allocation12 [shape = 'u8[512]{0}', space=vmem, size = 0x400, scoped, tag = 'input window, operand 2, single buffered']
    #allocation13 [shape = 'u8[8192]{0}', space=vmem, size = 0x2000, scoped, tag = 'input window, operand 3, single buffered']
    #allocation14 [shape = 's32[1]{0}', space=sflag, size = 0x4, scoped, tag = 'scoped memory for tpu_custom_call.1']
    #allocation15 [shape = 'u8[512]{0}', space=vmem, size = 0x400, scoped, tag = 'input window, operand 4, single buffered']
    #allocation16 [shape = 'u8[8192]{0}', space=vmem, size = 0x2000, scoped, tag = 'input window, operand 5, single buffered']
    #allocation17 [shape = 's32[1]{0}', space=sflag, size = 0x4, scoped, tag = 'scoped memory for tpu_custom_call.1']
    #allocation18 [shape = 'u8[512]{0}', space=vmem, size = 0x400, scoped, tag = 'input window, operand 6, single buffered']
    #allocation19 [shape = 'u8[512]{0}', space=vmem, size = 0x400, scoped, tag = 'input window, operand 7, single buffered']
    #allocation20 [shape = 's32[1]{0}', space=sflag, size = 0x4, scoped, tag = 'scoped memory for tpu_custom_call.1']
    #allocation21 [shape = 'u8[512]{0}', space=vmem, size = 0x400, scoped, tag = 'input window, operand 8, single buffered']
    #allocation22 [shape = 'u8[8192]{0}', space=vmem, size = 0x2000, scoped, tag = 'input window, operand 9, single buffered']
    #allocation23 [shape = 's32[1]{0}', space=sflag, size = 0x4, scoped, tag = 'scoped memory for tpu_custom_call.1']
    #allocation24 [shape = 'u8[512]{0}', space=vmem, size = 0x400, scoped, tag = 'input window, operand 10, single buffered']
    #allocation25 [shape = 'u8[32768]{0}', space=vmem, size = 0x8000, scoped, tag = 'input window, operand 11, single buffered']
    #allocation26 [shape = 's32[1]{0}', space=sflag, size = 0x4, scoped, tag = 'scoped memory for tpu_custom_call.1']
    #allocation27 [shape = 'u8[512]{0}', space=vmem, size = 0x400, scoped, tag = 'input window, operand 12, single buffered']
    #allocation28 [shape = 'u8[8192]{0}', space=vmem, size = 0x2000, scoped, tag = 'output window, operand 0']
    %18 = vsyncpa [#allocation8], 0
    %s19 = scalar_lea.sflag [#allocation8], 1
    %20 = vsyncpa %s19, 0
    %21 = vsyncpa [#allocation11], 0
    %22 = vsyncpa [#allocation14], 0
    %23 = vsyncpa [#allocation17], 0
    %24 = vsyncpa [#allocation20], 0
    %25 = vsyncpa [#allocation23], 0
    %26 = vsyncpa [#allocation26], 0
    %27 = vsyncpa [#allocation9], 0
    %s28 = scalar_lea.sflag [#allocation9], 1
    %29 = vsyncpa %s28, 0
    loop: start=0, step=1, limit=4
    $region2: #{tpu_custom_call.1} parent=1 // loop_pre_header
      _
    $region3: #{tpu_custom_call.1} parent=1 // loop_header
      %s31 = sphi 0, %s35
      %p32 = scmp.ge.s32.totalorder %s31, 4
      %s41 = sphi 0, %s43
      %s44 = sphi 0, %s41
      %s45 = sphi 0, %s44
      %s61 = sphi 0, %s45
      %s65 = sphi 0, %s65
      %s67 = sphi 0, %s65
      %s68 = sphi 0, %s67
      %s82 = sphi 0, %s68
      %s86 = sphi 0, %s86
      %s88 = sphi 0, %s86
      %s89 = sphi 0, %s88
      %s103 = sphi 0, %s89
      %s107 = sphi 0, %s107
      %s109 = sphi 0, %s107
      %s110 = sphi 0, %s109
      %s124 = sphi 0, %s110
      %s128 = sphi 0, %s128
      %s130 = sphi 0, %s128
      %s131 = sphi 0, %s130
      %s145 = sphi 0, %s131
      %s149 = sphi 0, %s149
      %s151 = sphi 0, %s149
      %s152 = sphi 0, %s151
      %s166 = sphi 0, %s152
      %s170 = sphi 0, %s170
      %s172 = sphi 0, %s170
      %s173 = sphi 0, %s172
      %s187 = sphi 0, %s173
      %s191 = sphi 0, %s191
      %s193 = sphi 0, %s191
      %s194 = sphi 0, %s193
      %s208 = sphi 0, %s194
      %s212 = sphi 0, %s212
      %s214 = sphi 0, %s212
      %s215 = sphi 0, %s214
      %s229 = sphi 0, %s215
      %s233 = sphi 0, %s233
      %s235 = sphi 0, %s233
      %s236 = sphi 0, %s235
      %s250 = sphi 0, %s236
      %s254 = sphi 0, %s254
      %s256 = sphi 0, %s254
      %s257 = sphi 0, %s256
      %s271 = sphi 0, %s257
      %s275 = sphi 0, %s275
      %s277 = sphi 0, %s275
      %s278 = sphi 0, %s277
      %s292 = sphi 0, %s278
      %s296 = sphi 0, %s296
      %s298 = sphi 0, %s296
      %s299 = sphi 0, %s298
      %s313 = sphi 0, %s299
      %s319 = sphi 0, %s321
      %s322 = sphi 0, %s319
      %s323 = sphi 0, %s322
      %s339 = sphi 0, %s323
    $region4: #{tpu_custom_call.1} parent=1 // loop_header_branch
      %34 = sbr.rel (%p32) target = $region8
    $region5: #{tpu_custom_call.1} parent=1 // loop_body
      %s36 = ssub.s32 %s31, 1
      %s37 = ssub.s32 %s31, 2
      %s38 = sadd.s32 %s31, 1
      %s39 = ssub.s32 %s31, %s38
      %p40 = scmp.eq.s32.totalorder %s39, 0
      %s42 = sadd.s32 %s41, 1
      %s43 = scalar_select %p40, %s41, %s42
      %p46 = pneg %p40
      %p47 = scmp.eq.s32.totalorder %s31, 1
      %p48 = por %p46, %p47
      %p49 = scmp.ne.s32.totalorder %s41, %s44
      %p50 = scmp.eq.s32.totalorder %s31, 0
      %p51 = por %p49, %p50
      %p52 = scmp.ne.s32.totalorder %s41, %s44
      %p53 = scmp.eq.s32.totalorder %s36, 1
      %p54 = por %p52, %p53
      %p55 = scmp.ne.s32.totalorder %s44, %s45
      %p56 = scmp.eq.s32.totalorder %s36, 0
      %p57 = por %p55, %p56
      %p58 = scmp.ne.s32.totalorder %s44, %s45
      %p59 = scmp.eq.s32.totalorder %s37, 1
      %p60 = por %p58, %p59
      %p62 = scmp.ne.s32.totalorder %s45, %s61
      %p63 = scmp.eq.s32.totalorder %s37, 0
      %p64 = por %p62, %p63
      %s66 = sadd.s32 %s65, 1
      %p69 = scmp.eq.s32.totalorder %s31, 1
      %p70 = scmp.ne.s32.totalorder %s65, %s67
      %p71 = scmp.eq.s32.totalorder %s31, 0
      %p72 = por %p70, %p71
      %p73 = scmp.ne.s32.totalorder %s65, %s67
      %p74 = scmp.eq.s32.totalorder %s36, 1
      %p75 = por %p73, %p74
      %p76 = scmp.ne.s32.totalorder %s67, %s68
      %p77 = scmp.eq.s32.totalorder %s36, 0
      %p78 = por %p76, %p77
      %p79 = scmp.ne.s32.totalorder %s67, %s68
      %p80 = scmp.eq.s32.totalorder %s37, 1
      %p81 = por %p79, %p80
      %p83 = scmp.ne.s32.totalorder %s68, %s82
      %p84 = scmp.eq.s32.totalorder %s37, 0
      %p85 = por %p83, %p84
      %s87 = sadd.s32 %s86, 1
      %p90 = scmp.eq.s32.totalorder %s31, 1
      %p91 = scmp.ne.s32.totalorder %s86, %s88
      %p92 = scmp.eq.s32.totalorder %s31, 0
      %p93 = por %p91, %p92
      %p94 = scmp.ne.s32.totalorder %s86, %s88
      %p95 = scmp.eq.s32.totalorder %s36, 1
      %p96 = por %p94, %p95
      %p97 = scmp.ne.s32.totalorder %s88, %s89
      %p98 = scmp.eq.s32.totalorder %s36, 0
      %p99 = por %p97, %p98
      %p100 = scmp.ne.s32.totalorder %s88, %s89
      %p101 = scmp.eq.s32.totalorder %s37, 1
      %p102 = por %p100, %p101
      %p104 = scmp.ne.s32.totalorder %s89, %s103
      %p105 = scmp.eq.s32.totalorder %s37, 0
      %p106 = por %p104, %p105
      %s108 = sadd.s32 %s107, 1
      %p111 = scmp.eq.s32.totalorder %s31, 1
      %p112 = scmp.ne.s32.totalorder %s107, %s109
      %p113 = scmp.eq.s32.totalorder %s31, 0
      %p114 = por %p112, %p113
      %p115 = scmp.ne.s32.totalorder %s107, %s109
      %p116 = scmp.eq.s32.totalorder %s36, 1
      %p117 = por %p115, %p116
      %p118 = scmp.ne.s32.totalorder %s109, %s110
      %p119 = scmp.eq.s32.totalorder %s36, 0
      %p120 = por %p118, %p119
      %p121 = scmp.ne.s32.totalorder %s109, %s110
      %p122 = scmp.eq.s32.totalorder %s37, 1
      %p123 = por %p121, %p122
      %p125 = scmp.ne.s32.totalorder %s110, %s124
      %p126 = scmp.eq.s32.totalorder %s37, 0
      %p127 = por %p125, %p126
      %s129 = sadd.s32 %s128, 1
      %p132 = scmp.eq.s32.totalorder %s31, 1
      %p133 = scmp.ne.s32.totalorder %s128, %s130
      %p134 = scmp.eq.s32.totalorder %s31, 0
      %p135 = por %p133, %p134
      %p136 = scmp.ne.s32.totalorder %s128, %s130
      %p137 = scmp.eq.s32.totalorder %s36, 1
      %p138 = por %p136, %p137
      %p139 = scmp.ne.s32.totalorder %s130, %s131
      %p140 = scmp.eq.s32.totalorder %s36, 0
      %p141 = por %p139, %p140
      %p142 = scmp.ne.s32.totalorder %s130, %s131
      %p143 = scmp.eq.s32.totalorder %s37, 1
      %p144 = por %p142, %p143
      %p146 = scmp.ne.s32.totalorder %s131, %s145
      %p147 = scmp.eq.s32.totalorder %s37, 0
      %p148 = por %p146, %p147
      %s150 = sadd.s32 %s149, 1
      %p153 = scmp.eq.s32.totalorder %s31, 1
      %p154 = scmp.ne.s32.totalorder %s149, %s151
      %p155 = scmp.eq.s32.totalorder %s31, 0
      %p156 = por %p154, %p155
      %p157 = scmp.ne.s32.totalorder %s149, %s151
      %p158 = scmp.eq.s32.totalorder %s36, 1
      %p159 = por %p157, %p158
      %p160 = scmp.ne.s32.totalorder %s151, %s152
      %p161 = scmp.eq.s32.totalorder %s36, 0
      %p162 = por %p160, %p161
      %p163 = scmp.ne.s32.totalorder %s151, %s152
      %p164 = scmp.eq.s32.totalorder %s37, 1
      %p165 = por %p163, %p164
      %p167 = scmp.ne.s32.totalorder %s152, %s166
      %p168 = scmp.eq.s32.totalorder %s37, 0
      %p169 = por %p167, %p168
      %s171 = sadd.s32 %s170, 1
      %p174 = scmp.eq.s32.totalorder %s31, 1
      %p175 = scmp.ne.s32.totalorder %s170, %s172
      %p176 = scmp.eq.s32.totalorder %s31, 0
      %p177 = por %p175, %p176
      %p178 = scmp.ne.s32.totalorder %s170, %s172
      %p179 = scmp.eq.s32.totalorder %s36, 1
      %p180 = por %p178, %p179
      %p181 = scmp.ne.s32.totalorder %s172, %s173
      %p182 = scmp.eq.s32.totalorder %s36, 0
      %p183 = por %p181, %p182
      %p184 = scmp.ne.s32.totalorder %s172, %s173
      %p185 = scmp.eq.s32.totalorder %s37, 1
      %p186 = por %p184, %p185
      %p188 = scmp.ne.s32.totalorder %s173, %s187
      %p189 = scmp.eq.s32.totalorder %s37, 0
      %p190 = por %p188, %p189
      %s192 = sadd.s32 %s191, 1
      %p195 = scmp.eq.s32.totalorder %s31, 1
      %p196 = scmp.ne.s32.totalorder %s191, %s193
      %p197 = scmp.eq.s32.totalorder %s31, 0
      %p198 = por %p196, %p197
      %p199 = scmp.ne.s32.totalorder %s191, %s193
      %p200 = scmp.eq.s32.totalorder %s36, 1
      %p201 = por %p199, %p200
      %p202 = scmp.ne.s32.totalorder %s193, %s194
      %p203 = scmp.eq.s32.totalorder %s36, 0
      %p204 = por %p202, %p203
      %p205 = scmp.ne.s32.totalorder %s193, %s194
      %p206 = scmp.eq.s32.totalorder %s37, 1
      %p207 = por %p205, %p206
      %p209 = scmp.ne.s32.totalorder %s194, %s208
      %p210 = scmp.eq.s32.totalorder %s37, 0
      %p211 = por %p209, %p210
      %s213 = sadd.s32 %s212, 1
      %p216 = scmp.eq.s32.totalorder %s31, 1
      %p217 = scmp.ne.s32.totalorder %s212, %s214
      %p218 = scmp.eq.s32.totalorder %s31, 0
      %p219 = por %p217, %p218
      %p220 = scmp.ne.s32.totalorder %s212, %s214
      %p221 = scmp.eq.s32.totalorder %s36, 1
      %p222 = por %p220, %p221
      %p223 = scmp.ne.s32.totalorder %s214, %s215
      %p224 = scmp.eq.s32.totalorder %s36, 0
      %p225 = por %p223, %p224
      %p226 = scmp.ne.s32.totalorder %s214, %s215
      %p227 = scmp.eq.s32.totalorder %s37, 1
      %p228 = por %p226, %p227
      %p230 = scmp.ne.s32.totalorder %s215, %s229
      %p231 = scmp.eq.s32.totalorder %s37, 0
      %p232 = por %p230, %p231
      %s234 = sadd.s32 %s233, 1
      %p237 = scmp.eq.s32.totalorder %s31, 1
      %p238 = scmp.ne.s32.totalorder %s233, %s235
      %p239 = scmp.eq.s32.totalorder %s31, 0
      %p240 = por %p238, %p239
      %p241 = scmp.ne.s32.totalorder %s233, %s235
      %p242 = scmp.eq.s32.totalorder %s36, 1
      %p243 = por %p241, %p242
      %p244 = scmp.ne.s32.totalorder %s235, %s236
      %p245 = scmp.eq.s32.totalorder %s36, 0
      %p246 = por %p244, %p245
      %p247 = scmp.ne.s32.totalorder %s235, %s236
      %p248 = scmp.eq.s32.totalorder %s37, 1
      %p249 = por %p247, %p248
      %p251 = scmp.ne.s32.totalorder %s236, %s250
      %p252 = scmp.eq.s32.totalorder %s37, 0
      %p253 = por %p251, %p252
      %s255 = sadd.s32 %s254, 1
      %p258 = scmp.eq.s32.totalorder %s31, 1
      %p259 = scmp.ne.s32.totalorder %s254, %s256
      %p260 = scmp.eq.s32.totalorder %s31, 0
      %p261 = por %p259, %p260
      %p262 = scmp.ne.s32.totalorder %s254, %s256
      %p263 = scmp.eq.s32.totalorder %s36, 1
      %p264 = por %p262, %p263
      %p265 = scmp.ne.s32.totalorder %s256, %s257
      %p266 = scmp.eq.s32.totalorder %s36, 0
      %p267 = por %p265, %p266
      %p268 = scmp.ne.s32.totalorder %s256, %s257
      %p269 = scmp.eq.s32.totalorder %s37, 1
      %p270 = por %p268, %p269
      %p272 = scmp.ne.s32.totalorder %s257, %s271
      %p273 = scmp.eq.s32.totalorder %s37, 0
      %p274 = por %p272, %p273
      %s276 = sadd.s32 %s275, 1
      %p279 = scmp.eq.s32.totalorder %s31, 1
      %p280 = scmp.ne.s32.totalorder %s275, %s277
      %p281 = scmp.eq.s32.totalorder %s31, 0
      %p282 = por %p280, %p281
      %p283 = scmp.ne.s32.totalorder %s275, %s277
      %p284 = scmp.eq.s32.totalorder %s36, 1
      %p285 = por %p283, %p284
      %p286 = scmp.ne.s32.totalorder %s277, %s278
      %p287 = scmp.eq.s32.totalorder %s36, 0
      %p288 = por %p286, %p287
      %p289 = scmp.ne.s32.totalorder %s277, %s278
      %p290 = scmp.eq.s32.totalorder %s37, 1
      %p291 = por %p289, %p290
      %p293 = scmp.ne.s32.totalorder %s278, %s292
      %p294 = scmp.eq.s32.totalorder %s37, 0
      %p295 = por %p293, %p294
      %s297 = sadd.s32 %s296, 1
      %p300 = scmp.eq.s32.totalorder %s31, 1
      %p301 = scmp.ne.s32.totalorder %s296, %s298
      %p302 = scmp.eq.s32.totalorder %s31, 0
      %p303 = por %p301, %p302
      %p304 = scmp.ne.s32.totalorder %s296, %s298
      %p305 = scmp.eq.s32.totalorder %s36, 1
      %p306 = por %p304, %p305
      %p307 = scmp.ne.s32.totalorder %s298, %s299
      %p308 = scmp.eq.s32.totalorder %s36, 0
      %p309 = por %p307, %p308
      %p310 = scmp.ne.s32.totalorder %s298, %s299
      %p311 = scmp.eq.s32.totalorder %s37, 1
      %p312 = por %p310, %p311
      %p314 = scmp.ne.s32.totalorder %s299, %s313
      %p315 = scmp.eq.s32.totalorder %s37, 0
      %p316 = por %p314, %p315
      %s317 = ssub.s32 %s31, %s38
      %p318 = scmp.eq.s32.totalorder %s317, 0
      %s320 = sadd.s32 %s319, 1
      %s321 = scalar_select %p318, %s319, %s320
      %p324 = pneg %p318
      %p325 = scmp.eq.s32.totalorder %s31, 1
      %p326 = por %p324, %p325
      %p327 = scmp.ne.s32.totalorder %s319, %s322
      %p328 = scmp.eq.s32.totalorder %s31, 0
      %p329 = por %p327, %p328
      %p330 = scmp.ne.s32.totalorder %s319, %s322
      %p331 = scmp.eq.s32.totalorder %s36, 1
      %p332 = por %p330, %p331
      %p333 = scmp.ne.s32.totalorder %s322, %s323
      %p334 = scmp.eq.s32.totalorder %s36, 0
      %p335 = por %p333, %p334
      %p336 = scmp.ne.s32.totalorder %s322, %s323
      %p337 = scmp.eq.s32.totalorder %s37, 1
      %p338 = por %p336, %p337
      %p340 = scmp.ne.s32.totalorder %s323, %s339
      %p341 = scmp.eq.s32.totalorder %s37, 0
      %p342 = por %p340, %p341
      %p343 = scmp.le.s32.totalorder 1, %s31
      %p344 = scmp.lt.s32.totalorder %s31, 3
      %p345 = pnand %p343, %p344
      %p346 = pneg %p345
      // Predicated region
      $region9: #{tpu_custom_call.1} parent=5 // pred_check
        _
      $region10: #{tpu_custom_call.1} parent=5 // pred_check_branch
        %348 = sbr.rel (%p345) target = $region12
      $region11: #{tpu_custom_call.1} parent=5 // pred_region
        %s349 = ssub.s32 %s31, 1
        // Predicated region
        $region13: #{tpu_custom_call.1} parent=11 // pred_check
          %p350 = pneg %p78
        $region14: #{tpu_custom_call.1} parent=11 // pred_check_branch
          %352 = sbr.rel (%p350) target = $region16
        $region15: #{tpu_custom_call.1} parent=11 // pred_region
          %s354 = ssub.s32 16, 16
          %355 = vsyncadd [#allocation11], %s354
          %s357 = sshll.u32 [#allocation10], 4
          %s358 = int_to_ptr.vmem [resolvable:$true] %s357
          %360 = dma.hbm_to_vmem [thread:$0]  %s1, 16, %s358, [#allocation11]
        $region16: #{tpu_custom_call.1} parent=11 // pred_fallthru
          _
        // Predicated region
        $region17: #{tpu_custom_call.1} parent=11 // pred_check
          %p361 = pneg %p99
        $region18: #{tpu_custom_call.1} parent=11 // pred_check_branch
          %363 = sbr.rel (%p361) target = $region20
        $region19: #{tpu_custom_call.1} parent=11 // pred_region
          %s365 = ssub.s32 16, 16
          %366 = vsyncadd [#allocation11], %s365
          %s368 = sshll.u32 [#allocation12], 4
          %s369 = int_to_ptr.vmem [resolvable:$true] %s368
          %371 = dma.hbm_to_vmem [thread:$0]  %s2, 16, %s369, [#allocation11]
        $region20: #{tpu_custom_call.1} parent=11 // pred_fallthru
          _
        // Predicated region
        $region21: #{tpu_custom_call.1} parent=11 // pred_check
          %p372 = pneg %p120
        $region22: #{tpu_custom_call.1} parent=11 // pred_check_branch
          %374 = sbr.rel (%p372) target = $region24
        $region23: #{tpu_custom_call.1} parent=11 // pred_region
          %s376 = ssub.s32 256, 256
          %377 = vsyncadd [#allocation14], %s376
          %s378 = sshll.u32 [#allocation13], 4
          %s379 = int_to_ptr.vmem [resolvable:$true] %s378
          %384 = dma.hbm_to_vmem [thread:$0]  %s3, 256, %s379, [#allocation14], 64, 64, 4
        $region24: #{tpu_custom_call.1} parent=11 // pred_fallthru
          _
        // Predicated region
        $region25: #{tpu_custom_call.1} parent=11 // pred_check
          %p385 = pneg %p141
        $region26: #{tpu_custom_call.1} parent=11 // pred_check_branch
          %387 = sbr.rel (%p385) target = $region28
        $region27: #{tpu_custom_call.1} parent=11 // pred_region
          %s389 = ssub.s32 16, 16
          %390 = vsyncadd [#allocation14], %s389
          %s392 = sshll.u32 [#allocation15], 4
          %s393 = int_to_ptr.vmem [resolvable:$true] %s392
          %395 = dma.hbm_to_vmem [thread:$0]  %s4, 16, %s393, [#allocation14]
        $region28: #{tpu_custom_call.1} parent=11 // pred_fallthru
          _
        // Predicated region
        $region29: #{tpu_custom_call.1} parent=11 // pred_check
          %p396 = pneg %p162
        $region30: #{tpu_custom_call.1} parent=11 // pred_check_branch
          %398 = sbr.rel (%p396) target = $region32
        $region31: #{tpu_custom_call.1} parent=11 // pred_region
          %s400 = ssub.s32 256, 256
          %401 = vsyncadd [#allocation17], %s400
          %s402 = sshll.u32 [#allocation16], 4
          %s403 = int_to_ptr.vmem [resolvable:$true] %s402
          %408 = dma.hbm_to_vmem [thread:$0]  %s5, 256, %s403, [#allocation17], 64, 64, 4
        $region32: #{tpu_custom_call.1} parent=11 // pred_fallthru
          _
        // Predicated region
        $region33: #{tpu_custom_call.1} parent=11 // pred_check
          %p409 = pneg %p183
        $region34: #{tpu_custom_call.1} parent=11 // pred_check_branch
          %411 = sbr.rel (%p409) target = $region36
        $region35: #{tpu_custom_call.1} parent=11 // pred_region
          %s413 = ssub.s32 16, 16
          %414 = vsyncadd [#allocation17], %s413
          %s416 = sshll.u32 [#allocation18], 4
          %s417 = int_to_ptr.vmem [resolvable:$true] %s416
          %419 = dma.hbm_to_vmem [thread:$0]  %s6, 16, %s417, [#allocation17]
        $region36: #{tpu_custom_call.1} parent=11 // pred_fallthru
          _
        // Predicated region
        $region37: #{tpu_custom_call.1} parent=11 // pred_check
          %p420 = pneg %p204
        $region38: #{tpu_custom_call.1} parent=11 // pred_check_branch
          %422 = sbr.rel (%p420) target = $region40
        $region39: #{tpu_custom_call.1} parent=11 // pred_region
          %s424 = ssub.s32 16, 16
          %425 = vsyncadd [#allocation20], %s424
          %s427 = sshll.u32 [#allocation19], 4
          %s428 = int_to_ptr.vmem [resolvable:$true] %s427
          %430 = dma.hbm_to_vmem [thread:$0]  %s7, 16, %s428, [#allocation20]
        $region40: #{tpu_custom_call.1} parent=11 // pred_fallthru
          _
        // Predicated region
        $region41: #{tpu_custom_call.1} parent=11 // pred_check
          %p431 = pneg %p225
        $region42: #{tpu_custom_call.1} parent=11 // pred_check_branch
          %433 = sbr.rel (%p431) target = $region44
        $region43: #{tpu_custom_call.1} parent=11 // pred_region
          %s435 = ssub.s32 16, 16
          %436 = vsyncadd [#allocation20], %s435
          %s438 = sshll.u32 [#allocation21], 4
          %s439 = int_to_ptr.vmem [resolvable:$true] %s438
          %441 = dma.hbm_to_vmem [thread:$0]  %s8, 16, %s439, [#allocation20]
        $region44: #{tpu_custom_call.1} parent=11 // pred_fallthru
          _
        // Predicated region
        $region45: #{tpu_custom_call.1} parent=11 // pred_check
          %p442 = pneg %p246
        $region46: #{tpu_custom_call.1} parent=11 // pred_check_branch
          %444 = sbr.rel (%p442) target = $region48
        $region47: #{tpu_custom_call.1} parent=11 // pred_region
          %s446 = ssub.s32 256, 256
          %447 = vsyncadd [#allocation23], %s446
          %s448 = sshll.u32 [#allocation22], 4
          %s449 = int_to_ptr.vmem [resolvable:$true] %s448
          %454 = dma.hbm_to_vmem [thread:$0]  %s9, 256, %s449, [#allocation23], 64, 64, 4
        $region48: #{tpu_custom_call.1} parent=11 // pred_fallthru
          _
        // Predicated region
        $region49: #{tpu_custom_call.1} parent=11 // pred_check
          %p455 = pneg %p267
        $region50: #{tpu_custom_call.1} parent=11 // pred_check_branch
          %457 = sbr.rel (%p455) target = $region52
        $region51: #{tpu_custom_call.1} parent=11 // pred_region
          %s459 = ssub.s32 16, 16
          %460 = vsyncadd [#allocation23], %s459
          %s462 = sshll.u32 [#allocation24], 4
          %s463 = int_to_ptr.vmem [resolvable:$true] %s462
          %465 = dma.hbm_to_vmem [thread:$0]  %s10, 16, %s463, [#allocation23]
        $region52: #{tpu_custom_call.1} parent=11 // pred_fallthru
          _
        // Predicated region
        $region53: #{tpu_custom_call.1} parent=11 // pred_check
          %p466 = pneg %p288
        $region54: #{tpu_custom_call.1} parent=11 // pred_check_branch
          %468 = sbr.rel (%p466) target = $region56
        $region55: #{tpu_custom_call.1} parent=11 // pred_region
          %s470 = ssub.s32 1024, 1024
          %471 = vsyncadd [#allocation26], %s470
          %s472 = sshll.u32 [#allocation25], 4
          %s473 = int_to_ptr.vmem [resolvable:$true] %s472
          %478 = dma.hbm_to_vmem [thread:$0]  %s11, 1024, %s473, [#allocation26], 64, 64, 4
        $region56: #{tpu_custom_call.1} parent=11 // pred_fallthru
          _
        // Predicated region
        $region57: #{tpu_custom_call.1} parent=11 // pred_check
          %p479 = pneg %p309
        $region58: #{tpu_custom_call.1} parent=11 // pred_check_branch
          %481 = sbr.rel (%p479) target = $region60
        $region59: #{tpu_custom_call.1} parent=11 // pred_region
          %s483 = ssub.s32 16, 16
          %484 = vsyncadd [#allocation26], %s483
          %s486 = sshll.u32 [#allocation27], 4
          %s487 = int_to_ptr.vmem [resolvable:$true] %s486
          %489 = dma.hbm_to_vmem [thread:$0]  %s12, 16, %s487, [#allocation26]
        $region60: #{tpu_custom_call.1} parent=11 // pred_fallthru
          _
      $region12: #{tpu_custom_call.1} parent=5 // pred_fallthru
        _
      %p490 = scmp.lt.s32.totalorder %s31, 2
      // Predicated region
      $region61: #{tpu_custom_call.1} parent=5 // pred_check
        %p491 = pneg %p490
      $region62: #{tpu_custom_call.1} parent=5 // pred_check_branch
        %493 = sbr.rel (%p491) target = $region64
      $region63: #{tpu_custom_call.1} parent=5 // pred_region
        // Predicated region
        $region65: #{tpu_custom_call.1} parent=63 // pred_check
          %p494 = pneg %p51
        $region66: #{tpu_custom_call.1} parent=63 // pred_check_branch
          %496 = sbr.rel (%p494) target = $region68
        $region67: #{tpu_custom_call.1} parent=63 // pred_region
          %s497 = sand.u32 %s41, 1
          %s498 = scalar_lea.sflag [#allocation8], %s497
          %s499 = sand.u32 %s41, 1
          %s500 = smul.addr %s499, 8
          %s501 = scalar_lea.vmem [#allocation7], %s500
          %s503 = ssub.s32 128, 128
          %504 = vsyncadd %s498, %s503
          %s505 = smul.addr %s31, 128
          %s506 = scalar_lea.hbm %s0, %s505
          %s508 = sshll.u32 %s501, 4
          %s509 = int_to_ptr.vmem [resolvable:$true] %s508
          %511 = dma.hbm_to_vmem [thread:$0]  %s506, 128, %s509, %s498
        $region68: #{tpu_custom_call.1} parent=63 // pred_fallthru
          _
      $region64: #{tpu_custom_call.1} parent=5 // pred_fallthru
        _
      %p512 = scmp.le.s32.totalorder 1, %s31
      %p513 = scmp.lt.s32.totalorder %s31, 3
      %p514 = pnand %p512, %p513
      %p515 = pneg %p514
      // Predicated region
      $region69: #{tpu_custom_call.1} parent=5 // pred_check
        _
      $region70: #{tpu_custom_call.1} parent=5 // pred_check_branch
        %517 = sbr.rel (%p514) target = $region72
      $region71: #{tpu_custom_call.1} parent=5 // pred_region
        %s518 = ssub.s32 %s31, 1
        %s519 = sand.u32 %s44, 1
        %s520 = scalar_lea.sflag [#allocation8], %s519
        %s521 = sand.u32 %s44, 1
        %s522 = smul.addr %s521, 8
        %s523 = scalar_lea.vmem [#allocation7], %s522
        // Predicated region
        $region73: #{tpu_custom_call.1} parent=71 // pred_check
          %p524 = pneg %p57
        $region74: #{tpu_custom_call.1} parent=71 // pred_check_branch
          %526 = sbr.rel (%p524) target = $region76
        $region75: #{tpu_custom_call.1} parent=71 // pred_region
          %527 = dma.done %s520, 128
        $region76: #{tpu_custom_call.1} parent=71 // pred_fallthru
          _
        // Predicated region
        $region77: #{tpu_custom_call.1} parent=71 // pred_check
          %p528 = pneg %p78
        $region78: #{tpu_custom_call.1} parent=71 // pred_check_branch
          %530 = sbr.rel (%p528) target = $region80
        $region79: #{tpu_custom_call.1} parent=71 // pred_region
          %531 = dma.done [#allocation11], 16
        $region80: #{tpu_custom_call.1} parent=71 // pred_fallthru
          _
        // Predicated region
        $region81: #{tpu_custom_call.1} parent=71 // pred_check
          %p532 = pneg %p99
        $region82: #{tpu_custom_call.1} parent=71 // pred_check_branch
          %534 = sbr.rel (%p532) target = $region84
        $region83: #{tpu_custom_call.1} parent=71 // pred_region
          %535 = dma.done [#allocation11], 16
        $region84: #{tpu_custom_call.1} parent=71 // pred_fallthru
          _
        // Predicated region
        $region85: #{tpu_custom_call.1} parent=71 // pred_check
          %p536 = pneg %p120
        $region86: #{tpu_custom_call.1} parent=71 // pred_check_branch
          %538 = sbr.rel (%p536) target = $region88
        $region87: #{tpu_custom_call.1} parent=71 // pred_region
          %539 = dma.done [#allocation14], 256
        $region88: #{tpu_custom_call.1} parent=71 // pred_fallthru
          _
        // Predicated region
        $region89: #{tpu_custom_call.1} parent=71 // pred_check
          %p540 = pneg %p141
        $region90: #{tpu_custom_call.1} parent=71 // pred_check_branch
          %542 = sbr.rel (%p540) target = $region92
        $region91: #{tpu_custom_call.1} parent=71 // pred_region
          %543 = dma.done [#allocation14], 16
        $region92: #{tpu_custom_call.1} parent=71 // pred_fallthru
          _
        // Predicated region
        $region93: #{tpu_custom_call.1} parent=71 // pred_check
          %p544 = pneg %p162
        $region94: #{tpu_custom_call.1} parent=71 // pred_check_branch
          %546 = sbr.rel (%p544) target = $region96
        $region95: #{tpu_custom_call.1} parent=71 // pred_region
          %547 = dma.done [#allocation17], 256
        $region96: #{tpu_custom_call.1} parent=71 // pred_fallthru
          _
        // Predicated region
        $region97: #{tpu_custom_call.1} parent=71 // pred_check
          %p548 = pneg %p183
        $region98: #{tpu_custom_call.1} parent=71 // pred_check_branch
          %550 = sbr.rel (%p548) target = $region100
        $region99: #{tpu_custom_call.1} parent=71 // pred_region
          %551 = dma.done [#allocation17], 16
        $region100: #{tpu_custom_call.1} parent=71 // pred_fallthru
          _
        // Predicated region
        $region101: #{tpu_custom_call.1} parent=71 // pred_check
          %p552 = pneg %p204
        $region102: #{tpu_custom_call.1} parent=71 // pred_check_branch
          %554 = sbr.rel (%p552) target = $region104
        $region103: #{tpu_custom_call.1} parent=71 // pred_region
          %555 = dma.done [#allocation20], 16
        $region104: #{tpu_custom_call.1} parent=71 // pred_fallthru
          _
        // Predicated region
        $region105: #{tpu_custom_call.1} parent=71 // pred_check
          %p556 = pneg %p225
        $region106: #{tpu_custom_call.1} parent=71 // pred_check_branch
          %558 = sbr.rel (%p556) target = $region108
        $region107: #{tpu_custom_call.1} parent=71 // pred_region
          %559 = dma.done [#allocation20], 16
        $region108: #{tpu_custom_call.1} parent=71 // pred_fallthru
          _
        // Predicated region
        $region109: #{tpu_custom_call.1} parent=71 // pred_check
          %p560 = pneg %p246
        $region110: #{tpu_custom_call.1} parent=71 // pred_check_branch
          %562 = sbr.rel (%p560) target = $region112
        $region111: #{tpu_custom_call.1} parent=71 // pred_region
          %563 = dma.done [#allocation23], 256
        $region112: #{tpu_custom_call.1} parent=71 // pred_fallthru
          _
        // Predicated region
        $region113: #{tpu_custom_call.1} parent=71 // pred_check
          %p564 = pneg %p267
        $region114: #{tpu_custom_call.1} parent=71 // pred_check_branch
          %566 = sbr.rel (%p564) target = $region116
        $region115: #{tpu_custom_call.1} parent=71 // pred_region
          %567 = dma.done [#allocation23], 16
        $region116: #{tpu_custom_call.1} parent=71 // pred_fallthru
          _
        // Predicated region
        $region117: #{tpu_custom_call.1} parent=71 // pred_check
          %p568 = pneg %p288
        $region118: #{tpu_custom_call.1} parent=71 // pred_check_branch
          %570 = sbr.rel (%p568) target = $region120
        $region119: #{tpu_custom_call.1} parent=71 // pred_region
          %571 = dma.done [#allocation26], 1024
        $region120: #{tpu_custom_call.1} parent=71 // pred_fallthru
          _
        // Predicated region
        $region121: #{tpu_custom_call.1} parent=71 // pred_check
          %p572 = pneg %p309
        $region122: #{tpu_custom_call.1} parent=71 // pred_check_branch
          %574 = sbr.rel (%p572) target = $region124
        $region123: #{tpu_custom_call.1} parent=71 // pred_region
          %575 = dma.done [#allocation26], 16
        $region124: #{tpu_custom_call.1} parent=71 // pred_fallthru
          _
        %s576 = sand.u32 %s44, 1
        %s577 = scalar_lea.sflag [#allocation8], %s576
        %s578 = sand.u32 %s44, 1
        %s579 = smul.addr %s578, 8
        %s580 = scalar_lea.vmem [#allocation7], %s579
        %p581 = pneg %p57
        %p582 = pneg %p54
        %p583 = pneg %p78
        %p584 = pneg %p75
        %p585 = pneg %p99
        %p586 = pneg %p96
        %p587 = pneg %p120
        %p588 = pneg %p117
        %p589 = pneg %p141
        %p590 = pneg %p138
        %p591 = pneg %p162
        %p592 = pneg %p159
        %p593 = pneg %p183
        %p594 = pneg %p180
        %p595 = pneg %p204
        %p596 = pneg %p201
        %p597 = pneg %p225
        %p598 = pneg %p222
        %p599 = pneg %p246
        %p600 = pneg %p243
        %p601 = pneg %p267
        %p602 = pneg %p264
        %p603 = pneg %p288
        %p604 = pneg %p285
        %p605 = pneg %p309
        %p606 = pneg %p306
        %p607 = pneg %p335
        %p608 = pneg %p332
        %s609 = sand.u32 %s322, 1
        %s610 = scalar_lea.sflag [#allocation9], %s609
        %s611 = sand.u32 %s322, 1
        %s612 = smul.addr %s611, 8
        %s613 = scalar_lea.vmem [#allocation28], %s612
        %v616 = vlaneseq
        %v617 = vshrl.u32 %v616, 7
        %v618 = vlaneseq
        %v619 = vand.u32 %v618, 127
        %vm620 = vcmp.le.s32.totalorder %v619, %v617
        %v621 = vsel %vm620, 0.0, -1e+30
        %v622 = vld [vmem:[%s523] sm:$0xff]
        %v623 = vld [vmem:[#allocation10] sm:$0x1]
        %v624 = vld [vmem:[#allocation12] sm:$0x1]
        %vm625 = vcmask 261120
        %v626 = vsel %vm625, %v622, 0.0
        %627 = vadd.xlane.f32.xlu0 %v626
        %v628 = vpop.xlane.xlu0 %627
        %v629 = vrcp.pop 32.0
        %v630 = vmul.f32 %v628, %v629
        %v631 = vsub.f32 %v622, %v630
        %v632 = vmul.f32 %v631, %v631
        %v633 = vsel %vm625, %v632, 0.0
        %634 = vadd.xlane.f32.xlu0 %v633
        %v635 = vpop.xlane.xlu0 %634
        %v636 = vmul.f32 %v635, %v629
        %v637 = vadd.f32 %v636, 1e-05
        %v638 = vrsqrt.pop %v637
        %v639 = vmul.f32 %v631, %v638
        %v641 = vlaneseq
        %v642 = vshrl.u32 %v641, 7
        %v643 = vsub.s32 0, %v642
        %v644 = vrot.slane %v623, %v643
        %v646 = vmul.f32 %v639, %v644
        %v648 = vlaneseq
        %v649 = vshrl.u32 %v648, 7
        %v650 = vsub.s32 0, %v649
        %v651 = vrot.slane %v624, %v650
        %v653 = vadd.f32 %v646, %v651
        %v654 = vpack.c.bf16 %v653, %v653
        %v655 = vld [vmem:[#allocation13] sm:$0xf]
        %v656 = vld [vmem:[#allocation13 + $0x4] sm:$0xf]
        %v657 = vld [vmem:[#allocation13 + $0x8] sm:$0xf]
        %v658 = vld [vmem:[#allocation13 + $0xc] sm:$0xf]
        %v659 = vld [vmem:[#allocation15] sm:$0x1]
        %v661 = vlaneseq
        %v662 = vshrl.u32 %v661, 7
        %v663 = vsub.s32 0, %v662
        %v664 = vrot.slane %v659, %v663
        %v670 = vunpack.c.l.b16 %v655
        %v671 = vunpack.c.l.b16 %v656
        %v672 = vunpack.c.l.b16 %v657
        %v673 = vunpack.c.l.b16 %v658
        %v674 = vpack.c.b16 %v671, %v670
        %v675 = vpack.c.b16 %v673, %v672
        %v679 = vsel %vm625, %v654, 0
        %681 = vmatprep.subr.bf16.mxu0 0
        %682 = vmatpush1.bf16.msra.mxu0 %v674
        %683 = vmatprep.subr.bf16.mxu0 0
        %684 = vmatpush1.bf16.msra.mxu0 %v675
        %685 = vmatprep.subr.bf16.mxu0 0
        %686 = vmatpush1.bf16.msra.mxu0 0
        %687 = vmatprep.subr.bf16.mxu0 0
        %688 = vmatpush1.bf16.msra.mxu0 0
        %689 = vmatprep.subr.bf16.mxu0 0
        %690 = vmatpush1.bf16.msra.mxu0 0
        %691 = vmatprep.subr.bf16.mxu0 0
        %692 = vmatpush1.bf16.msra.mxu0 0
        %693 = vmatprep.subr.bf16.mxu0 0
        %694 = vmatpush1.bf16.msra.mxu0 0
        %695 = vmatprep.subr.bf16.mxu0 0
        %696 = vmatpush1.bf16.msra.mxu0 0
        %697 = vmatprep.subr.bf16.mxu0 0
        %698 = vmatpush1.bf16.msra.mxu0 0
        %699 = vmatprep.subr.bf16.mxu0 0
        %700 = vmatpush1.bf16.msra.mxu0 0
        %701 = vmatprep.subr.bf16.mxu0 0
        %702 = vmatpush1.bf16.msra.mxu0 0
        %703 = vmatprep.subr.bf16.mxu0 0
        %704 = vmatpush1.bf16.msra.mxu0 0
        %705 = vmatprep.subr.bf16.mxu0 0
        %706 = vmatpush1.bf16.msra.mxu0 0
        %707 = vmatprep.subr.bf16.mxu0 0
        %708 = vmatpush1.bf16.msra.mxu0 0
        %709 = vmatprep.subr.bf16.mxu0 0
        %710 = vmatpush1.bf16.msra.mxu0 0
        %711 = vmatprep.subr.bf16.mxu0 0
        %712 = vmatpush1.bf16.msra.mxu0 0
        %713 = vmatprep.mubr.bf16.mxu0 0
        %714 = vmatmul.mubr.bf16.gmra.mrb[0].mxu0 %v679
        %v715 = vpop.f32.mrb[0].mxu0
        %v716 = vadd.f32 %v664, %v715
        %v717 = vpop.f32.mrb[0].mxu0
        %v718 = vpop.f32.mrb[0].mxu0
        %v719 = vpop.f32.mrb[0].mxu0
        %720 = vdwg.mxu0
        %v721 = vpack.c.bf16 %v716, %v716
        %vm722 = vcmask 781312
        %723 = vst.msk [vmem:[#allocation2] sm:$0xf] %vm722, %v721
        %v724 = vld [vmem:[#allocation2] sm:$0xf]
        %v725 = vmul.bf16 %v724, 1052065461
        %vm726 = vcmask 60416
        %727 = vst.msk [vmem:[#allocation3] sm:$0xf] %vm726, %v725
        %v728 = vld [vmem:[#allocation2] sm:$0xf]
        %730 = vrot.lane.b32.xlu0 %v728, 96
        %v731 = vpop.permute.xlu0 %730
        %733 = vst.msk [vmem:[#allocation4] sm:$0xf] %vm726, %v731
        %v734 = vld [vmem:[#allocation2] sm:$0xf]
        %736 = vrot.lane.b32.xlu0 %v734, 64
        %v737 = vpop.permute.xlu0 %736
        %739 = vst.msk [vmem:[#allocation5] sm:$0xf] %vm726, %v737
        %v740 = vld [vmem:[#allocation2] sm:$0xf]
        %v741 = vmul.bf16 %v740, 1052065461
        %743 = vrot.lane.b32.xlu0 %v741, 120
        %v744 = vpop.permute.xlu0 %743
        %s746 = scalar_lea.vmem [#allocation3], 4
        %747 = vst.msk [vmem:[%s746] sm:$0xf] %vm726, %v744
        %v748 = vld [vmem:[#allocation2] sm:$0xf]
        %750 = vrot.lane.b32.xlu0 %v748, 88
        %v751 = vpop.permute.xlu0 %750
        %s753 = scalar_lea.vmem [#allocation4], 4
        %754 = vst.msk [vmem:[%s753] sm:$0xf] %vm726, %v751
        %v755 = vld [vmem:[#allocation2] sm:$0xf]
        %757 = vrot.lane.b32.xlu0 %v755, 56
        %v758 = vpop.permute.xlu0 %757
        %s760 = scalar_lea.vmem [#allocation5], 4
        %761 = vst.msk [vmem:[%s760] sm:$0xf] %vm726, %v758
        %v762 = vld [vmem:[#allocation2] sm:$0xf]
        %v763 = vmul.bf16 %v762, 1052065461
        %765 = vrot.lane.b32.xlu0 %v763, 112
        %v766 = vpop.permute.xlu0 %765
        %s768 = scalar_lea.vmem [#allocation3], 8
        %769 = vst.msk [vmem:[%s768] sm:$0xf] %vm726, %v766
        %v770 = vld [vmem:[#allocation2] sm:$0xf]
        %772 = vrot.lane.b32.xlu0 %v770, 80
        %v773 = vpop.permute.xlu0 %772
        %s775 = scalar_lea.vmem [#allocation4], 8
        %776 = vst.msk [vmem:[%s775] sm:$0xf] %vm726, %v773
        %v777 = vld [vmem:[#allocation2] sm:$0xf]
        %779 = vrot.lane.b32.xlu0 %v777, 48
        %v780 = vpop.permute.xlu0 %779
        %s782 = scalar_lea.vmem [#allocation5], 8
        %783 = vst.msk [vmem:[%s782] sm:$0xf] %vm726, %v780
        %v784 = vld [vmem:[#allocation2] sm:$0xf]
        %v785 = vmul.bf16 %v784, 1052065461
        %787 = vrot.lane.b32.xlu0 %v785, 104
        %v788 = vpop.permute.xlu0 %787
        %s790 = scalar_lea.vmem [#allocation3], 12
        %791 = vst.msk [vmem:[%s790] sm:$0xf] %vm726, %v788
        %v792 = vld [vmem:[#allocation2] sm:$0xf]
        %794 = vrot.lane.b32.xlu0 %v792, 72
        %v795 = vpop.permute.xlu0 %794
        %s797 = scalar_lea.vmem [#allocation4], 12
        %798 = vst.msk [vmem:[%s797] sm:$0xf] %vm726, %v795
        %v799 = vld [vmem:[#allocation2] sm:$0xf]
        %801 = vrot.lane.b32.xlu0 %v799, 40
        %v802 = vpop.permute.xlu0 %801
        %s804 = scalar_lea.vmem [#allocation5], 12
        %805 = vst.msk [vmem:[%s804] sm:$0xf] %vm726, %v802
        %v806 = vld [vmem:[#allocation3] sm:$0xf]
        %v807 = vld [vmem:[#allocation3 + $0x4] sm:$0xf]
        %v808 = vld [vmem:[#allocation3 + $0x8] sm:$0xf]
        %v809 = vld [vmem:[#allocation3 + $0xc] sm:$0xf]
        %v810 = vld [vmem:[#allocation4] sm:$0xf]
        %v811 = vld [vmem:[#allocation4 + $0x4] sm:$0xf]
        %v812 = vld [vmem:[#allocation4 + $0x8] sm:$0xf]
        %v813 = vld [vmem:[#allocation4 + $0xc] sm:$0xf]
        %v814 = vld [vmem:[#allocation5] sm:$0xf]
        %v815 = vld [vmem:[#allocation5 + $0x4] sm:$0xf]
        %v816 = vld [vmem:[#allocation5 + $0x8] sm:$0xf]
        %v817 = vld [vmem:[#allocation5 + $0xc] sm:$0xf]
        %vm818 = vcmask 64512
        %v820 = vsel %vm818, %v806, 0
        %v823 = vsel %vm818, %v810, 0
        %825 = vmatprep.subr.bf16.mxu0 0
        %826 = vmatpush1.bf16.xpose.msra.mxu0 %v823
        %827 = vmatprep.subr.bf16.mxu0 0
        %828 = vmatpush1.bf16.xpose.msra.mxu0 0
        %829 = vmatprep.subr.bf16.mxu0 0
        %830 = vmatpush1.bf16.xpose.msra.mxu0 0
        %831 = vmatprep.subr.bf16.mxu0 0
        %832 = vmatpush1.bf16.xpose.msra.mxu0 0
        %833 = vmatprep.subr.bf16.mxu0 0
        %834 = vmatpush1.bf16.xpose.msra.mxu0 0
        %835 = vmatprep.subr.bf16.mxu0 0
        %836 = vmatpush1.bf16.xpose.msra.mxu0 0
        %837 = vmatprep.subr.bf16.mxu0 0
        %838 = vmatpush1.bf16.xpose.msra.mxu0 0
        %839 = vmatprep.subr.bf16.mxu0 0
        %840 = vmatpush1.bf16.xpose.msra.mxu0 0
        %841 = vmatprep.subr.bf16.mxu0 0
        %842 = vmatpush1.bf16.xpose.msra.mxu0 0
        %843 = vmatprep.subr.bf16.mxu0 0
        %844 = vmatpush1.bf16.xpose.msra.mxu0 0
        %845 = vmatprep.subr.bf16.mxu0 0
        %846 = vmatpush1.bf16.xpose.msra.mxu0 0
        %847 = vmatprep.subr.bf16.mxu0 0
        %848 = vmatpush1.bf16.xpose.msra.mxu0 0
        %849 = vmatprep.subr.bf16.mxu0 0
        %850 = vmatpush1.bf16.xpose.msra.mxu0 0
        %851 = vmatprep.subr.bf16.mxu0 0
        %852 = vmatpush1.bf16.xpose.msra.mxu0 0
        %853 = vmatprep.subr.bf16.mxu0 0
        %854 = vmatpush1.bf16.xpose.msra.mxu0 0
        %855 = vmatprep.subr.bf16.mxu0 0
        %856 = vmatpush1.bf16.xpose.msra.mxu0 0
        %857 = vmatprep.mubr.bf16.mxu0 0
        %858 = vmatmul.mubr.bf16.gmra.mrb[0].mxu0 %v820
        %v859 = vpop.f32.mrb[0].mxu0
        %v860 = vadd.f32 %v621, %v859
        %v861 = vpop.f32.mrb[0].mxu0
        %v862 = vpop.f32.mrb[0].mxu0
        %v863 = vpop.f32.mrb[0].mxu0
        %864 = vdwg.mxu0
        %v866 = vsel %vm818, %v807, 0
        %v869 = vsel %vm818, %v811, 0
        %871 = vmatprep.subr.bf16.mxu0 0
        %872 = vmatpush1.bf16.xpose.msra.mxu0 %v869
        %873 = vmatprep.subr.bf16.mxu0 0
        %874 = vmatpush1.bf16.xpose.msra.mxu0 0
        %875 = vmatprep.subr.bf16.mxu0 0
        %876 = vmatpush1.bf16.xpose.msra.mxu0 0
        %877 = vmatprep.subr.bf16.mxu0 0
        %878 = vmatpush1.bf16.xpose.msra.mxu0 0
        %879 = vmatprep.subr.bf16.mxu0 0
        %880 = vmatpush1.bf16.xpose.msra.mxu0 0
        %881 = vmatprep.subr.bf16.mxu0 0
        %882 = vmatpush1.bf16.xpose.msra.mxu0 0
        %883 = vmatprep.subr.bf16.mxu0 0
        %884 = vmatpush1.bf16.xpose.msra.mxu0 0
        %885 = vmatprep.subr.bf16.mxu0 0
        %886 = vmatpush1.bf16.xpose.msra.mxu0 0
        %887 = vmatprep.subr.bf16.mxu0 0
        %888 = vmatpush1.bf16.xpose.msra.mxu0 0
        %889 = vmatprep.subr.bf16.mxu0 0
        %890 = vmatpush1.bf16.xpose.msra.mxu0 0
        %891 = vmatprep.subr.bf16.mxu0 0
        %892 = vmatpush1.bf16.xpose.msra.mxu0 0
        %893 = vmatprep.subr.bf16.mxu0 0
        %894 = vmatpush1.bf16.xpose.msra.mxu0 0
        %895 = vmatprep.subr.bf16.mxu0 0
        %896 = vmatpush1.bf16.xpose.msra.mxu0 0
        %897 = vmatprep.subr.bf16.mxu0 0
        %898 = vmatpush1.bf16.xpose.msra.mxu0 0
        %899 = vmatprep.subr.bf16.mxu0 0
        %900 = vmatpush1.bf16.xpose.msra.mxu0 0
        %901 = vmatprep.subr.bf16.mxu0 0
        %902 = vmatpush1.bf16.xpose.msra.mxu0 0
        %903 = vmatprep.mubr.bf16.mxu0 0
        %904 = vmatmul.mubr.bf16.gmra.mrb[0].mxu0 %v866
        %v905 = vpop.f32.mrb[0].mxu0
        %v906 = vadd.f32 %v621, %v905
        %v907 = vpop.f32.mrb[0].mxu0
        %v908 = vpop.f32.mrb[0].mxu0
        %v909 = vpop.f32.mrb[0].mxu0
        %910 = vdwg.mxu0
        %v912 = vsel %vm818, %v808, 0
        %v915 = vsel %vm818, %v812, 0
        %917 = vmatprep.subr.bf16.mxu0 0
        %918 = vmatpush1.bf16.xpose.msra.mxu0 %v915
        %919 = vmatprep.subr.bf16.mxu0 0
        %920 = vmatpush1.bf16.xpose.msra.mxu0 0
        %921 = vmatprep.subr.bf16.mxu0 0
        %922 = vmatpush1.bf16.xpose.msra.mxu0 0
        %923 = vmatprep.subr.bf16.mxu0 0
        %924 = vmatpush1.bf16.xpose.msra.mxu0 0
        %925 = vmatprep.subr.bf16.mxu0 0
        %926 = vmatpush1.bf16.xpose.msra.mxu0 0
        %927 = vmatprep.subr.bf16.mxu0 0
        %928 = vmatpush1.bf16.xpose.msra.mxu0 0
        %929 = vmatprep.subr.bf16.mxu0 0
        %930 = vmatpush1.bf16.xpose.msra.mxu0 0
        %931 = vmatprep.subr.bf16.mxu0 0
        %932 = vmatpush1.bf16.xpose.msra.mxu0 0
        %933 = vmatprep.subr.bf16.mxu0 0
        %934 = vmatpush1.bf16.xpose.msra.mxu0 0
        %935 = vmatprep.subr.bf16.mxu0 0
        %936 = vmatpush1.bf16.xpose.msra.mxu0 0
        %937 = vmatprep.subr.bf16.mxu0 0
        %938 = vmatpush1.bf16.xpose.msra.mxu0 0
        %939 = vmatprep.subr.bf16.mxu0 0
        %940 = vmatpush1.bf16.xpose.msra.mxu0 0
        %941 = vmatprep.subr.bf16.mxu0 0
        %942 = vmatpush1.bf16.xpose.msra.mxu0 0
        %943 = vmatprep.subr.bf16.mxu0 0
        %944 = vmatpush1.bf16.xpose.msra.mxu0 0
        %945 = vmatprep.subr.bf16.mxu0 0
        %946 = vmatpush1.bf16.xpose.msra.mxu0 0
        %947 = vmatprep.subr.bf16.mxu0 0
        %948 = vmatpush1.bf16.xpose.msra.mxu0 0
        %949 = vmatprep.mubr.bf16.mxu0 0
        %950 = vmatmul.mubr.bf16.gmra.mrb[0].mxu0 %v912
        %v951 = vpop.f32.mrb[0].mxu0
        %v952 = vadd.f32 %v621, %v951
        %v953 = vpop.f32.mrb[0].mxu0
        %v954 = vpop.f32.mrb[0].mxu0
        %v955 = vpop.f32.mrb[0].mxu0
        %956 = vdwg.mxu0
        %v958 = vsel %vm818, %v809, 0
        %v961 = vsel %vm818, %v813, 0
        %963 = vmatprep.subr.bf16.mxu0 0
        %964 = vmatpush1.bf16.xpose.msra.mxu0 %v961
        %965 = vmatprep.subr.bf16.mxu0 0
        %966 = vmatpush1.bf16.xpose.msra.mxu0 0
        %967 = vmatprep.subr.bf16.mxu0 0
        %968 = vmatpush1.bf16.xpose.msra.mxu0 0
        %969 = vmatprep.subr.bf16.mxu0 0
        %970 = vmatpush1.bf16.xpose.msra.mxu0 0
        %971 = vmatprep.subr.bf16.mxu0 0
        %972 = vmatpush1.bf16.xpose.msra.mxu0 0
        %973 = vmatprep.subr.bf16.mxu0 0
        %974 = vmatpush1.bf16.xpose.msra.mxu0 0
        %975 = vmatprep.subr.bf16.mxu0 0
        %976 = vmatpush1.bf16.xpose.msra.mxu0 0
        %977 = vmatprep.subr.bf16.mxu0 0
        %978 = vmatpush1.bf16.xpose.msra.mxu0 0
        %979 = vmatprep.subr.bf16.mxu0 0
        %980 = vmatpush1.bf16.xpose.msra.mxu0 0
        %981 = vmatprep.subr.bf16.mxu0 0
        %982 = vmatpush1.bf16.xpose.msra.mxu0 0
        %983 = vmatprep.subr.bf16.mxu0 0
        %984 = vmatpush1.bf16.xpose.msra.mxu0 0
        %985 = vmatprep.subr.bf16.mxu0 0
        %986 = vmatpush1.bf16.xpose.msra.mxu0 0
        %987 = vmatprep.subr.bf16.mxu0 0
        %988 = vmatpush1.bf16.xpose.msra.mxu0 0
        %989 = vmatprep.subr.bf16.mxu0 0
        %990 = vmatpush1.bf16.xpose.msra.mxu0 0
        %991 = vmatprep.subr.bf16.mxu0 0
        %992 = vmatpush1.bf16.xpose.msra.mxu0 0
        %993 = vmatprep.subr.bf16.mxu0 0
        %994 = vmatpush1.bf16.xpose.msra.mxu0 0
        %995 = vmatprep.mubr.bf16.mxu0 0
        %996 = vmatmul.mubr.bf16.gmra.mrb[0].mxu0 %v958
        %v997 = vpop.f32.mrb[0].mxu0
        %v998 = vadd.f32 %v621, %v997
        %v999 = vpop.f32.mrb[0].mxu0
        %v1000 = vpop.f32.mrb[0].mxu0
        %v1001 = vpop.f32.mrb[0].mxu0
        %1002 = vdwg.mxu0
        %v1003 = vsel %vm818, %v860, -inf
        %1004 = vmax.xlane.f32.xlu0 %v1003
        %v1005 = vpop.xlane.xlu0 %1004
        %v1006 = vsel %vm818, %v906, -inf
        %1007 = vmax.xlane.f32.xlu0 %v1006
        %v1008 = vpop.xlane.xlu0 %1007
        %v1009 = vsel %vm818, %v952, -inf
        %1010 = vmax.xlane.f32.xlu0 %v1009
        %v1011 = vpop.xlane.xlu0 %1010
        %v1012 = vsel %vm818, %v998, -inf
        %1013 = vmax.xlane.f32.xlu0 %v1012
        %v1014 = vpop.xlane.xlu0 %1013
        %v1015 = vsub.f32 %v860, %v1005
        %v1016 = vsub.f32 %v906, %v1008
        %v1017 = vsub.f32 %v952, %v1011
        %v1018 = vsub.f32 %v998, %v1014
        %v1019 = vmul.f32 %v1015, 1.442695
        %v1020 = vpow.pop %v1019
        %v1021 = vmul.f32 %v1016, 1.442695
        %v1022 = vpow.pop %v1021
        %v1023 = vmul.f32 %v1017, 1.442695
        %v1024 = vpow.pop %v1023
        %v1025 = vmul.f32 %v1018, 1.442695
        %v1026 = vpow.pop %v1025
        %v1027 = vsel %vm818, %v1020, 0.0
        %1028 = vadd.xlane.f32.xlu0 %v1027
        %v1029 = vpop.xlane.xlu0 %1028
        %v1030 = vsel %vm818, %v1022, 0.0
        %1031 = vadd.xlane.f32.xlu0 %v1030
        %v1032 = vpop.xlane.xlu0 %1031
        %v1033 = vsel %vm818, %v1024, 0.0
        %1034 = vadd.xlane.f32.xlu0 %v1033
        %v1035 = vpop.xlane.xlu0 %1034
        %v1036 = vsel %vm818, %v1026, 0.0
        %1037 = vadd.xlane.f32.xlu0 %v1036
        %v1038 = vpop.xlane.xlu0 %1037
        %v1039 = vrcp.pop %v1029
        %v1040 = vrcp.pop %v1032
        %v1041 = vrcp.pop %v1035
        %v1042 = vrcp.pop %v1038
        %v1043 = vmul.f32 %v1020, %v1039
        %v1044 = vmul.f32 %v1022, %v1040
        %v1045 = vmul.f32 %v1024, %v1041
        %v1046 = vmul.f32 %v1026, %v1042
        %v1047 = vpack.c.bf16 %v1043, %v1043
        %v1048 = vpack.c.bf16 %v1044, %v1044
        %v1049 = vpack.c.bf16 %v1045, %v1045
        %v1050 = vpack.c.bf16 %v1046, %v1046
        %v1052 = vsel %vm818, %v1047, 0
        %vm1054 = vcmask 1043456
        %v1056 = vsel %vm1054, %v814, 0
        %1058 = vmatprep.subr.bf16.mxu0 0
        %1059 = vmatpush1.bf16.msra.mxu0 %v1056
        %1060 = vmatprep.subr.bf16.mxu0 0
        %1061 = vmatpush1.bf16.msra.mxu0 0
        %1062 = vmatprep.subr.bf16.mxu0 0
        %1063 = vmatpush1.bf16.msra.mxu0 0
        %1064 = vmatprep.subr.bf16.mxu0 0
        %1065 = vmatpush1.bf16.msra.mxu0 0
        %1066 = vmatprep.subr.bf16.mxu0 0
        %1067 = vmatpush1.bf16.msra.mxu0 0
        %1068 = vmatprep.subr.bf16.mxu0 0
        %1069 = vmatpush1.bf16.msra.mxu0 0
        %1070 = vmatprep.subr.bf16.mxu0 0
        %1071 = vmatpush1.bf16.msra.mxu0 0
        %1072 = vmatprep.subr.bf16.mxu0 0
        %1073 = vmatpush1.bf16.msra.mxu0 0
        %1074 = vmatprep.subr.bf16.mxu0 0
        %1075 = vmatpush1.bf16.msra.mxu0 0
        %1076 = vmatprep.subr.bf16.mxu0 0
        %1077 = vmatpush1.bf16.msra.mxu0 0
        %1078 = vmatprep.subr.bf16.mxu0 0
        %1079 = vmatpush1.bf16.msra.mxu0 0
        %1080 = vmatprep.subr.bf16.mxu0 0
        %1081 = vmatpush1.bf16.msra.mxu0 0
        %1082 = vmatprep.subr.bf16.mxu0 0
        %1083 = vmatpush1.bf16.msra.mxu0 0
        %1084 = vmatprep.subr.bf16.mxu0 0
        %1085 = vmatpush1.bf16.msra.mxu0 0
        %1086 = vmatprep.subr.bf16.mxu0 0
        %1087 = vmatpush1.bf16.msra.mxu0 0
        %1088 = vmatprep.subr.bf16.mxu0 0
        %1089 = vmatpush1.bf16.msra.mxu0 0
        %1090 = vmatprep.mubr.bf16.mxu0 0
        %1091 = vmatmul.mubr.bf16.gmra.mrb[0].mxu0 %v1052
        %v1092 = vpop.f32.mrb[0].mxu0
        %v1093 = vadd.f32 0.0, %v1092
        %v1094 = vpop.f32.mrb[0].mxu0
        %v1095 = vpop.f32.mrb[0].mxu0
        %v1096 = vpop.f32.mrb[0].mxu0
        %1097 = vdwg.mxu0
        %v1099 = vsel %vm818, %v1048, 0
        %v1102 = vsel %vm1054, %v815, 0
        %1104 = vmatprep.subr.bf16.mxu0 0
        %1105 = vmatpush1.bf16.msra.mxu0 %v1102
        %1106 = vmatprep.subr.bf16.mxu0 0
        %1107 = vmatpush1.bf16.msra.mxu0 0
        %1108 = vmatprep.subr.bf16.mxu0 0
        %1109 = vmatpush1.bf16.msra.mxu0 0
        %1110 = vmatprep.subr.bf16.mxu0 0
        %1111 = vmatpush1.bf16.msra.mxu0 0
        %1112 = vmatprep.subr.bf16.mxu0 0
        %1113 = vmatpush1.bf16.msra.mxu0 0
        %1114 = vmatprep.subr.bf16.mxu0 0
        %1115 = vmatpush1.bf16.msra.mxu0 0
        %1116 = vmatprep.subr.bf16.mxu0 0
        %1117 = vmatpush1.bf16.msra.mxu0 0
        %1118 = vmatprep.subr.bf16.mxu0 0
        %1119 = vmatpush1.bf16.msra.mxu0 0
        %1120 = vmatprep.subr.bf16.mxu0 0
        %1121 = vmatpush1.bf16.msra.mxu0 0
        %1122 = vmatprep.subr.bf16.mxu0 0
        %1123 = vmatpush1.bf16.msra.mxu0 0
        %1124 = vmatprep.subr.bf16.mxu0 0
        %1125 = vmatpush1.bf16.msra.mxu0 0
        %1126 = vmatprep.subr.bf16.mxu0 0
        %1127 = vmatpush1.bf16.msra.mxu0 0
        %1128 = vmatprep.subr.bf16.mxu0 0
        %1129 = vmatpush1.bf16.msra.mxu0 0
        %1130 = vmatprep.subr.bf16.mxu0 0
        %1131 = vmatpush1.bf16.msra.mxu0 0
        %1132 = vmatprep.subr.bf16.mxu0 0
        %1133 = vmatpush1.bf16.msra.mxu0 0
        %1134 = vmatprep.subr.bf16.mxu0 0
        %1135 = vmatpush1.bf16.msra.mxu0 0
        %1136 = vmatprep.mubr.bf16.mxu0 0
        %1137 = vmatmul.mubr.bf16.gmra.mrb[0].mxu0 %v1099
        %v1138 = vpop.f32.mrb[0].mxu0
        %v1139 = vadd.f32 0.0, %v1138
        %v1140 = vpop.f32.mrb[0].mxu0
        %v1141 = vpop.f32.mrb[0].mxu0
        %v1142 = vpop.f32.mrb[0].mxu0
        %1143 = vdwg.mxu0
        %v1145 = vsel %vm818, %v1049, 0
        %v1148 = vsel %vm1054, %v816, 0
        %1150 = vmatprep.subr.bf16.mxu0 0
        %1151 = vmatpush1.bf16.msra.mxu0 %v1148
        %1152 = vmatprep.subr.bf16.mxu0 0
        %1153 = vmatpush1.bf16.msra.mxu0 0
        %1154 = vmatprep.subr.bf16.mxu0 0
        %1155 = vmatpush1.bf16.msra.mxu0 0
        %1156 = vmatprep.subr.bf16.mxu0 0
        %1157 = vmatpush1.bf16.msra.mxu0 0
        %1158 = vmatprep.subr.bf16.mxu0 0
        %1159 = vmatpush1.bf16.msra.mxu0 0
        %1160 = vmatprep.subr.bf16.mxu0 0
        %1161 = vmatpush1.bf16.msra.mxu0 0
        %1162 = vmatprep.subr.bf16.mxu0 0
        %1163 = vmatpush1.bf16.msra.mxu0 0
        %1164 = vmatprep.subr.bf16.mxu0 0
        %1165 = vmatpush1.bf16.msra.mxu0 0
        %1166 = vmatprep.subr.bf16.mxu0 0
        %1167 = vmatpush1.bf16.msra.mxu0 0
        %1168 = vmatprep.subr.bf16.mxu0 0
        %1169 = vmatpush1.bf16.msra.mxu0 0
        %1170 = vmatprep.subr.bf16.mxu0 0
        %1171 = vmatpush1.bf16.msra.mxu0 0
        %1172 = vmatprep.subr.bf16.mxu0 0
        %1173 = vmatpush1.bf16.msra.mxu0 0
        %1174 = vmatprep.subr.bf16.mxu0 0
        %1175 = vmatpush1.bf16.msra.mxu0 0
        %1176 = vmatprep.subr.bf16.mxu0 0
        %1177 = vmatpush1.bf16.msra.mxu0 0
        %1178 = vmatprep.subr.bf16.mxu0 0
        %1179 = vmatpush1.bf16.msra.mxu0 0
        %1180 = vmatprep.subr.bf16.mxu0 0
        %1181 = vmatpush1.bf16.msra.mxu0 0
        %1182 = vmatprep.mubr.bf16.mxu0 0
        %1183 = vmatmul.mubr.bf16.gmra.mrb[0].mxu0 %v1145
        %v1184 = vpop.f32.mrb[0].mxu0
        %v1185 = vadd.f32 0.0, %v1184
        %v1186 = vpop.f32.mrb[0].mxu0
        %v1187 = vpop.f32.mrb[0].mxu0
        %v1188 = vpop.f32.mrb[0].mxu0
        %1189 = vdwg.mxu0
        %v1191 = vsel %vm818, %v1050, 0
        %v1194 = vsel %vm1054, %v817, 0
        %1196 = vmatprep.subr.bf16.mxu0 0
        %1197 = vmatpush1.bf16.msra.mxu0 %v1194
        %1198 = vmatprep.subr.bf16.mxu0 0
        %1199 = vmatpush1.bf16.msra.mxu0 0
        %1200 = vmatprep.subr.bf16.mxu0 0
        %1201 = vmatpush1.bf16.msra.mxu0 0
        %1202 = vmatprep.subr.bf16.mxu0 0
        %1203 = vmatpush1.bf16.msra.mxu0 0
        %1204 = vmatprep.subr.bf16.mxu0 0
        %1205 = vmatpush1.bf16.msra.mxu0 0
        %1206 = vmatprep.subr.bf16.mxu0 0
        %1207 = vmatpush1.bf16.msra.mxu0 0
        %1208 = vmatprep.subr.bf16.mxu0 0
        %1209 = vmatpush1.bf16.msra.mxu0 0
        %1210 = vmatprep.subr.bf16.mxu0 0
        %1211 = vmatpush1.bf16.msra.mxu0 0
        %1212 = vmatprep.subr.bf16.mxu0 0
        %1213 = vmatpush1.bf16.msra.mxu0 0
        %1214 = vmatprep.subr.bf16.mxu0 0
        %1215 = vmatpush1.bf16.msra.mxu0 0
        %1216 = vmatprep.subr.bf16.mxu0 0
        %1217 = vmatpush1.bf16.msra.mxu0 0
        %1218 = vmatprep.subr.bf16.mxu0 0
        %1219 = vmatpush1.bf16.msra.mxu0 0
        %1220 = vmatprep.subr.bf16.mxu0 0
        %1221 = vmatpush1.bf16.msra.mxu0 0
        %1222 = vmatprep.subr.bf16.mxu0 0
        %1223 = vmatpush1.bf16.msra.mxu0 0
        %1224 = vmatprep.subr.bf16.mxu0 0
        %1225 = vmatpush1.bf16.msra.mxu0 0
        %1226 = vmatprep.subr.bf16.mxu0 0
        %1227 = vmatpush1.bf16.msra.mxu0 0
        %1228 = vmatprep.mubr.bf16.mxu0 0
        %1229 = vmatmul.mubr.bf16.gmra.mrb[0].mxu0 %v1191
        %v1230 = vpop.f32.mrb[0].mxu0
        %v1231 = vadd.f32 0.0, %v1230
        %v1232 = vpop.f32.mrb[0].mxu0
        %v1233 = vpop.f32.mrb[0].mxu0
        %v1234 = vpop.f32.mrb[0].mxu0
        %1235 = vdwg.mxu0
        %v1236 = vpack.c.bf16 %v1093, %v1093
        %1237 = vst.msk [vmem:[#allocation6] sm:$0xf] %vm726, %v1236
        %v1238 = vpack.c.bf16 %v1139, %v1139
        %v1240 = vunpack.c.l.b16 %v1238
        %v1241 = vpack.c.b16 %v1240, %v1240
        %1242 = vrot.lane.b32.xlu0 %v1241, 8
        %v1243 = vpop.permute.xlu0 %1242
        %vm1245 = vcmask 126016
        %1246 = vst.msk [vmem:[#allocation6] sm:$0xf] %vm1245, %v1243
        %v1247 = vpack.c.bf16 %v1185, %v1185
        %v1249 = vunpack.c.l.b16 %v1247
        %v1250 = vpack.c.b16 %v1249, %v1249
        %1251 = vrot.lane.b32.xlu0 %v1250, 16
        %v1252 = vpop.permute.xlu0 %1251
        %vm1254 = vcmask 191616
        %1255 = vst.msk [vmem:[#allocation6] sm:$0xf] %vm1254, %v1252
        %v1256 = vpack.c.bf16 %v1231, %v1231
        %v1258 = vunpack.c.l.b16 %v1256
        %v1259 = vpack.c.b16 %v1258, %v1258
        %1260 = vrot.lane.b32.xlu0 %v1259, 24
        %v1261 = vpop.permute.xlu0 %1260
        %vm1263 = vcmask 257216
        %1264 = vst.msk [vmem:[#allocation6] sm:$0xf] %vm1263, %v1261
        %v1265 = vld [vmem:[%s523] sm:$0xff]
        %v1266 = vld [vmem:[#allocation6] sm:$0xf]
        %v1267 = vld [vmem:[#allocation16] sm:$0xf]
        %v1268 = vld [vmem:[#allocation16 + $0x4] sm:$0xf]
        %v1269 = vld [vmem:[#allocation16 + $0x8] sm:$0xf]
        %v1270 = vld [vmem:[#allocation16 + $0xc] sm:$0xf]
        %v1275 = vunpack.c.l.b16 %v1267
        %v1276 = vunpack.c.l.b16 %v1268
        %v1277 = vunpack.c.l.b16 %v1269
        %v1278 = vunpack.c.l.b16 %v1270
        %v1279 = vpack.c.b16 %v1276, %v1275
        %v1280 = vpack.c.b16 %v1278, %v1277
        %v1284 = vsel %vm625, %v1266, 0
        %1286 = vmatprep.subr.bf16.mxu0 0
        %1287 = vmatpush1.bf16.msra.mxu0 %v1279
        %1288 = vmatprep.subr.bf16.mxu0 0
        %1289 = vmatpush1.bf16.msra.mxu0 %v1280
        %1290 = vmatprep.subr.bf16.mxu0 0
        %1291 = vmatpush1.bf16.msra.mxu0 0
        %1292 = vmatprep.subr.bf16.mxu0 0
        %1293 = vmatpush1.bf16.msra.mxu0 0
        %1294 = vmatprep.subr.bf16.mxu0 0
        %1295 = vmatpush1.bf16.msra.mxu0 0
        %1296 = vmatprep.subr.bf16.mxu0 0
        %1297 = vmatpush1.bf16.msra.mxu0 0
        %1298 = vmatprep.subr.bf16.mxu0 0
        %1299 = vmatpush1.bf16.msra.mxu0 0
        %1300 = vmatprep.subr.bf16.mxu0 0
        %1301 = vmatpush1.bf16.msra.mxu0 0
        %1302 = vmatprep.subr.bf16.mxu0 0
        %1303 = vmatpush1.bf16.msra.mxu0 0
        %1304 = vmatprep.subr.bf16.mxu0 0
        %1305 = vmatpush1.bf16.msra.mxu0 0
        %1306 = vmatprep.subr.bf16.mxu0 0
        %1307 = vmatpush1.bf16.msra.mxu0 0
        %1308 = vmatprep.subr.bf16.mxu0 0
        %1309 = vmatpush1.bf16.msra.mxu0 0
        %1310 = vmatprep.subr.bf16.mxu0 0
        %1311 = vmatpush1.bf16.msra.mxu0 0
        %1312 = vmatprep.subr.bf16.mxu0 0
        %1313 = vmatpush1.bf16.msra.mxu0 0
        %1314 = vmatprep.subr.bf16.mxu0 0
        %1315 = vmatpush1.bf16.msra.mxu0 0
        %1316 = vmatprep.subr.bf16.mxu0 0
        %1317 = vmatpush1.bf16.msra.mxu0 0
        %1318 = vmatprep.mubr.bf16.mxu0 0
        %1319 = vmatmul.mubr.bf16.gmra.mrb[0].mxu0 %v1284
        %v1320 = vpop.f32.mrb[0].mxu0
        %v1321 = vadd.f32 0.0, %v1320
        %v1322 = vpop.f32.mrb[0].mxu0
        %v1323 = vpop.f32.mrb[0].mxu0
        %v1324 = vpop.f32.mrb[0].mxu0
        %1325 = vdwg.mxu0
        %v1326 = vadd.f32 %v1265, %v1321
        %v1327 = vld [vmem:[#allocation18] sm:$0x1]
        %v1329 = vlaneseq
        %v1330 = vshrl.u32 %v1329, 7
        %v1331 = vsub.s32 0, %v1330
        %v1332 = vrot.slane %v1327, %v1331
        %v1334 = vadd.f32 %v1326, %v1332
        %1335 = vst.msk [vmem:[%s613] sm:$0xff] %vm625, %v1334
        %v1336 = vld [vmem:[%s613] sm:$0xff]
        %v1337 = vld [vmem:[#allocation19] sm:$0x1]
        %v1338 = vld [vmem:[#allocation21] sm:$0x1]
        %v1339 = vsel %vm625, %v1336, 0.0
        %1340 = vadd.xlane.f32.xlu0 %v1339
        %v1341 = vpop.xlane.xlu0 %1340
        %v1342 = vmul.f32 %v1341, %v629
        %v1343 = vsub.f32 %v1336, %v1342
        %v1344 = vmul.f32 %v1343, %v1343
        %v1345 = vsel %vm625, %v1344, 0.0
        %1346 = vadd.xlane.f32.xlu0 %v1345
        %v1347 = vpop.xlane.xlu0 %1346
        %v1348 = vmul.f32 %v1347, %v629
        %v1349 = vadd.f32 %v1348, 1e-05
        %v1350 = vrsqrt.pop %v1349
        %v1351 = vmul.f32 %v1343, %v1350
        %v1353 = vlaneseq
        %v1354 = vshrl.u32 %v1353, 7
        %v1355 = vsub.s32 0, %v1354
        %v1356 = vrot.slane %v1337, %v1355
        %v1358 = vmul.f32 %v1351, %v1356
        %v1360 = vlaneseq
        %v1361 = vshrl.u32 %v1360, 7
        %v1362 = vsub.s32 0, %v1361
        %v1363 = vrot.slane %v1338, %v1362
        %v1365 = vadd.f32 %v1358, %v1363
        %v1366 = vpack.c.bf16 %v1365, %v1365
        %v1367 = vld [vmem:[#allocation22] sm:$0xf]
        %v1368 = vld [vmem:[#allocation22 + $0x4] sm:$0xf]
        %v1369 = vld [vmem:[#allocation22 + $0x8] sm:$0xf]
        %v1370 = vld [vmem:[#allocation22 + $0xc] sm:$0xf]
        %v1371 = vld [vmem:[#allocation24] sm:$0x1]
        %v1373 = vlaneseq
        %v1374 = vshrl.u32 %v1373, 7
        %v1375 = vsub.s32 0, %v1374
        %v1376 = vrot.slane %v1371, %v1375
        %v1382 = vunpack.c.l.b16 %v1367
        %v1383 = vunpack.c.l.b16 %v1368
        %v1384 = vunpack.c.l.b16 %v1369
        %v1385 = vunpack.c.l.b16 %v1370
        %v1386 = vpack.c.b16 %v1383, %v1382
        %v1387 = vpack.c.b16 %v1385, %v1384
        %v1391 = vsel %vm625, %v1366, 0
        %1393 = vmatprep.subr.bf16.mxu0 0
        %1394 = vmatpush1.bf16.msra.mxu0 %v1386
        %1395 = vmatprep.subr.bf16.mxu0 0
        %1396 = vmatpush1.bf16.msra.mxu0 %v1387
        %1397 = vmatprep.subr.bf16.mxu0 0
        %1398 = vmatpush1.bf16.msra.mxu0 0
        %1399 = vmatprep.subr.bf16.mxu0 0
        %1400 = vmatpush1.bf16.msra.mxu0 0
        %1401 = vmatprep.subr.bf16.mxu0 0
        %1402 = vmatpush1.bf16.msra.mxu0 0
        %1403 = vmatprep.subr.bf16.mxu0 0
        %1404 = vmatpush1.bf16.msra.mxu0 0
        %1405 = vmatprep.subr.bf16.mxu0 0
        %1406 = vmatpush1.bf16.msra.mxu0 0
        %1407 = vmatprep.subr.bf16.mxu0 0
        %1408 = vmatpush1.bf16.msra.mxu0 0
        %1409 = vmatprep.subr.bf16.mxu0 0
        %1410 = vmatpush1.bf16.msra.mxu0 0
        %1411 = vmatprep.subr.bf16.mxu0 0
        %1412 = vmatpush1.bf16.msra.mxu0 0
        %1413 = vmatprep.subr.bf16.mxu0 0
        %1414 = vmatpush1.bf16.msra.mxu0 0
        %1415 = vmatprep.subr.bf16.mxu0 0
        %1416 = vmatpush1.bf16.msra.mxu0 0
        %1417 = vmatprep.subr.bf16.mxu0 0
        %1418 = vmatpush1.bf16.msra.mxu0 0
        %1419 = vmatprep.subr.bf16.mxu0 0
        %1420 = vmatpush1.bf16.msra.mxu0 0
        %1421 = vmatprep.subr.bf16.mxu0 0
        %1422 = vmatpush1.bf16.msra.mxu0 0
        %1423 = vmatprep.subr.bf16.mxu0 0
        %1424 = vmatpush1.bf16.msra.mxu0 0
        %1425 = vmatprep.mubr.bf16.mxu0 0
        %1426 = vmatmul.mubr.bf16.gmra.mrb[0].mxu0 %v1391
        %v1427 = vpop.f32.mrb[0].mxu0
        %v1428 = vadd.f32 %v1376, %v1427
        %v1429 = vpop.f32.mrb[0].mxu0
        %v1430 = vpop.f32.mrb[0].mxu0
        %v1431 = vpop.f32.mrb[0].mxu0
        %1432 = vdwg.mxu0
        %v1433 = vmul.f32 %v1428, 0.5
        %v1434 = vmul.f32 %v1428, 0.044715
        %v1435 = vmul.f32 %v1434, %v1428
        %v1436 = vmul.f32 %v1435, %v1428
        %v1437 = vadd.f32 %v1428, %v1436
        %v1438 = vmul.f32 %v1437, 0.7978846
        %v1439 = vtanh.pop %v1438
        %v1440 = vadd.f32 %v1439, 1.0
        %v1441 = vmul.f32 %v1433, %v1440
        %v1442 = vpack.c.bf16 %v1441, %v1441
        %v1443 = vld [vmem:[#allocation25] sm:$0xf]
        %v1444 = vld [vmem:[#allocation25 + $0x4] sm:$0xf]
        %v1445 = vld [vmem:[#allocation25 + $0x8] sm:$0xf]
        %v1446 = vld [vmem:[#allocation25 + $0xc] sm:$0xf]
        %v1447 = vld [vmem:[#allocation25 + $0x10] sm:$0xf]
        %v1448 = vld [vmem:[#allocation25 + $0x14] sm:$0xf]
        %v1449 = vld [vmem:[#allocation25 + $0x18] sm:$0xf]
        %v1450 = vld [vmem:[#allocation25 + $0x1c] sm:$0xf]
        %v1451 = vld [vmem:[#allocation25 + $0x20] sm:$0xf]
        %v1452 = vld [vmem:[#allocation25 + $0x24] sm:$0xf]
        %v1453 = vld [vmem:[#allocation25 + $0x28] sm:$0xf]
        %v1454 = vld [vmem:[#allocation25 + $0x2c] sm:$0xf]
        %v1455 = vld [vmem:[#allocation25 + $0x30] sm:$0xf]
        %v1456 = vld [vmem:[#allocation25 + $0x34] sm:$0xf]
        %v1457 = vld [vmem:[#allocation25 + $0x38] sm:$0xf]
        %v1458 = vld [vmem:[#allocation25 + $0x3c] sm:$0xf]
        %v1459 = vld [vmem:[#allocation27] sm:$0x1]
        %v1461 = vlaneseq
        %v1462 = vshrl.u32 %v1461, 7
        %v1463 = vsub.s32 0, %v1462
        %v1464 = vrot.slane %v1459, %v1463
        %v1482 = vunpack.c.l.b16 %v1443
        %v1483 = vunpack.c.l.b16 %v1444
        %v1484 = vunpack.c.l.b16 %v1445
        %v1485 = vunpack.c.l.b16 %v1446
        %v1486 = vunpack.c.l.b16 %v1447
        %v1487 = vunpack.c.l.b16 %v1448
        %v1488 = vunpack.c.l.b16 %v1449
        %v1489 = vunpack.c.l.b16 %v1450
        %v1490 = vunpack.c.l.b16 %v1451
        %v1491 = vunpack.c.l.b16 %v1452
        %v1492 = vunpack.c.l.b16 %v1453
        %v1493 = vunpack.c.l.b16 %v1454
        %v1494 = vunpack.c.l.b16 %v1455
        %v1495 = vunpack.c.l.b16 %v1456
        %v1496 = vunpack.c.l.b16 %v1457
        %v1497 = vunpack.c.l.b16 %v1458
        %v1498 = vpack.c.b16 %v1483, %v1482
        %v1499 = vpack.c.b16 %v1485, %v1484
        %v1500 = vpack.c.b16 %v1487, %v1486
        %v1501 = vpack.c.b16 %v1489, %v1488
        %v1502 = vpack.c.b16 %v1491, %v1490
        %v1503 = vpack.c.b16 %v1493, %v1492
        %v1504 = vpack.c.b16 %v1495, %v1494
        %v1505 = vpack.c.b16 %v1497, %v1496
        %1514 = vmatprep.subr.bf16.mxu0 0
        %1515 = vmatpush1.bf16.msra.mxu0 %v1498
        %1516 = vmatprep.subr.bf16.mxu0 0
        %1517 = vmatpush1.bf16.msra.mxu0 %v1499
        %1518 = vmatprep.subr.bf16.mxu0 0
        %1519 = vmatpush1.bf16.msra.mxu0 %v1500
        %1520 = vmatprep.subr.bf16.mxu0 0
        %1521 = vmatpush1.bf16.msra.mxu0 %v1501
        %1522 = vmatprep.subr.bf16.mxu0 0
        %1523 = vmatpush1.bf16.msra.mxu0 %v1502
        %1524 = vmatprep.subr.bf16.mxu0 0
        %1525 = vmatpush1.bf16.msra.mxu0 %v1503
        %1526 = vmatprep.subr.bf16.mxu0 0
        %1527 = vmatpush1.bf16.msra.mxu0 %v1504
        %1528 = vmatprep.subr.bf16.mxu0 0
        %1529 = vmatpush1.bf16.msra.mxu0 %v1505
        %1530 = vmatprep.subr.bf16.mxu0 0
        %1531 = vmatpush1.bf16.msra.mxu0 0
        %1532 = vmatprep.subr.bf16.mxu0 0
        %1533 = vmatpush1.bf16.msra.mxu0 0
        %1534 = vmatprep.subr.bf16.mxu0 0
        %1535 = vmatpush1.bf16.msra.mxu0 0
        %1536 = vmatprep.subr.bf16.mxu0 0
        %1537 = vmatpush1.bf16.msra.mxu0 0
        %1538 = vmatprep.subr.bf16.mxu0 0
        %1539 = vmatpush1.bf16.msra.mxu0 0
        %1540 = vmatprep.subr.bf16.mxu0 0
        %1541 = vmatpush1.bf16.msra.mxu0 0
        %1542 = vmatprep.subr.bf16.mxu0 0
        %1543 = vmatpush1.bf16.msra.mxu0 0
        %1544 = vmatprep.subr.bf16.mxu0 0
        %1545 = vmatpush1.bf16.msra.mxu0 0
        %1546 = vmatprep.mubr.bf16.mxu0 0
        %1547 = vmatmul.mubr.bf16.gmra.mrb[0].mxu0 %v1442
        %v1548 = vpop.f32.mrb[0].mxu0
        %v1549 = vadd.f32 %v1464, %v1548
        %v1550 = vpop.f32.mrb[0].mxu0
        %v1551 = vpop.f32.mrb[0].mxu0
        %v1552 = vpop.f32.mrb[0].mxu0
        %1553 = vdwg.mxu0
        %v1554 = vadd.f32 %v1336, %v1549
        %1555 = vst.msk [vmem:[%s613] sm:$0xff] %vm625, %v1554
        %s1556 = sand.u32 %s322, 1
        %s1557 = scalar_lea.sflag [#allocation9], %s1556
        %s1558 = sand.u32 %s322, 1
        %s1559 = smul.addr %s1558, 8
        %s1560 = scalar_lea.vmem [#allocation28], %s1559
        // Predicated region
        $region125: #{tpu_custom_call.1} parent=71 // pred_check
          %p1561 = pneg %p332
        $region126: #{tpu_custom_call.1} parent=71 // pred_check_branch
          %1563 = sbr.rel (%p1561) target = $region128
        $region127: #{tpu_custom_call.1} parent=71 // pred_region
          %s1565 = ssub.s32 128, 128
          %1566 = vsyncadd %s1557, %s1565
          %s1567 = smul.addr %s36, 128
          %s1568 = scalar_lea.hbm %s13, %s1567
          %s1570 = sshll.u32 %s1560, 4
          %s1571 = int_to_ptr.vmem [resolvable:$true] %s1570
          %1573 = dma.vmem_to_hbm [thread:$0]  %s1571, 128, %s1568, %s1557
        $region128: #{tpu_custom_call.1} parent=71 // pred_fallthru
          _
      $region72: #{tpu_custom_call.1} parent=5 // pred_fallthru
        _
      %p1574 = scmp.le.s32.totalorder 2, %s31
      // Predicated region
      $region129: #{tpu_custom_call.1} parent=5 // pred_check
        %p1575 = pneg %p1574
      $region130: #{tpu_custom_call.1} parent=5 // pred_check_branch
        %1577 = sbr.rel (%p1575) target = $region132
      $region131: #{tpu_custom_call.1} parent=5 // pred_region
        %s1578 = ssub.s32 %s31, 2
        // Predicated region
        $region133: #{tpu_custom_call.1} parent=131 // pred_check
          %p1579 = pneg %p338
        $region134: #{tpu_custom_call.1} parent=131 // pred_check_branch
          %1581 = sbr.rel (%p1579) target = $region136
        $region135: #{tpu_custom_call.1} parent=131 // pred_region
          %s1582 = sand.u32 %s323, 1
          %s1583 = scalar_lea.sflag [#allocation9], %s1582
          %s1584 = sand.u32 %s323, 1
          %s1585 = smul.addr %s1584, 8
          %s1586 = scalar_lea.vmem [#allocation28], %s1585
          %1587 = dma.done %s1583, 128
        $region136: #{tpu_custom_call.1} parent=131 // pred_fallthru
          _
      $region132: #{tpu_custom_call.1} parent=5 // pred_fallthru
        _
    $region6: #{tpu_custom_call.1} parent=1 // loop_footer
      %s35 = sadd.s32 1, %s31
    $region7: #{tpu_custom_call.1} parent=1 // loop_footer_branch
      %30 = sbr.rel target = $region3
    $region8: #{tpu_custom_call.1} parent=1 // loop_exit
      _
    %1588 = vsyncpa [#allocation8], 1
    %s1589 = scalar_lea.sflag [#allocation8], 1
    %1590 = vsyncpa %s1589, 1
    %1591 = vsyncpa [#allocation11], 1
    %1592 = vsyncpa [#allocation14], 1
    %1593 = vsyncpa [#allocation17], 1
    %1594 = vsyncpa [#allocation20], 1
    %1595 = vsyncpa [#allocation23], 1
    %1596 = vsyncpa [#allocation26], 1
    %1597 = vsyncpa [#allocation9], 1
    %s1598 = scalar_lea.sflag [#allocation9], 1
    %1599 = vsyncpa %s1598, 1

</llo_original>
